<compile_context>
chip_gen: v7x
topology: tpu7x:2x2x1
jax: 0.10.0
libtpu: 0.0.40
codegen_flags: <defaults>
</compile_context>

<pallas_src>
import jax
import jax.numpy as jnp
from jax.experimental import pallas as pl
from jax.experimental.pallas import tpu as pltpu

SELU_ALPHA = 1.6732632423543772
SELU_SCALE = 1.0507009873554805
LN_EPS = 1e-5
NEG_PAD = -1e30  # bias fill for padded atom lanes -> exp underflows to 0


def _round_up(x, m):
    return (x + m - 1) // m * m


def _selu(x):
    # scale * (max(0,x) + min(0, alpha*(exp(x)-1))); exp arg clamped so the
    # inactive branch of the where never overflows.
    return SELU_SCALE * jnp.where(
        x > 0.0, x, SELU_ALPHA * (jnp.exp(jnp.minimum(x, 0.0)) - 1.0))


def _layer_norm(h, g, beta):
    mu = jnp.mean(h, axis=-1, keepdims=True)
    var = jnp.mean((h - mu) ** 2, axis=-1, keepdims=True)
    return (h - mu) * jax.lax.rsqrt(var + LN_EPS) * g + beta


def _make_fused_kernel(num_hidden, output_size, n_atoms_pad):
    """Fused kernel: summary + MLP + final linear + per-head softmax."""

    def kernel(*refs):
        stock_ref, chars_ref, convw_ref, convb_ref = refs[:4]
        w0a_ref, w0b_ref, b0_ref, g0_ref, beta0_ref = refs[4:9]
        idx = 9
        rest_hidden = []
        for _ in range(num_hidden - 1):
            rest_hidden.append(refs[idx:idx + 4])      # (W, b, gamma, beta)
            idx += 4
        wf_ref, bf_ref = refs[idx], refs[idx + 1]
        out_ref = refs[idx + 2]

        stock = stock_ref[...]                         # (bB, conv_size)
        chars = chars_ref[...]                         # (bB, char_size)

        # Conv1d(kernel_size=1) followed by .mean(2) is exactly
        # w[k] * mean_t(stock) + b[k]  (by linearity).
        stock_mean = jnp.mean(stock, axis=-1, keepdims=True)           # (bB,1)
        ss_act = _selu(stock_mean * convw_ref[...] + convb_ref[...])   # (bB,K)

        # First hidden layer consumes cat([selu(summary), chars], -1);
        # implemented as a split matmul (identical math, no lane concat).
        h = (jnp.dot(ss_act, w0a_ref[...], preferred_element_type=jnp.float32)
             + jnp.dot(chars, w0b_ref[...], preferred_element_type=jnp.float32)
             + b0_ref[...])
        x = _layer_norm(_selu(h), g0_ref[...], beta0_ref[...])

        # Remaining hidden layers: Linear -> SELU -> LayerNorm (unrolled).
        for (w_ref, b_ref, g_ref, beta_ref) in rest_hidden:
            h = jnp.dot(x, w_ref[...],
                        preferred_element_type=jnp.float32) + b_ref[...]
            x = _layer_norm(_selu(h), g_ref[...], beta_ref[...])

        # Final Linear: (bB, output_size * n_atoms_pad), lane-dense.
        logits = jnp.dot(x, wf_ref[...],
                         preferred_element_type=jnp.float32) + bf_ref[...]

        # Fused softmax, one 128-lane-aligned segment per output head.
        # Padded lanes carry a -1e30 bias, so exp() == 0 and the sum over the
        # real n_atoms lanes is exact.
        for j in range(output_size):
            lo = j * n_atoms_pad
            seg = logits[:, lo:lo + n_atoms_pad]
            m = jnp.max(seg, axis=-1, keepdims=True)
            e = jnp.exp(seg - m)
            s = jnp.sum(e, axis=-1, keepdims=True)
            r = pl.reciprocal(s, approx=True)          # EUP slot
            r = r * (2.0 - s * r)                      # one NR step -> ~f32
            out_ref[:, lo:lo + n_atoms_pad] = e * r

    return kernel


def c51_forward(o, params, *, conv_size, n_kernels, output_size, n_atoms,
                block_b_max=512):
    """Pallas implementation of C51.forward.  o: (B, input_size) f32."""
    B, input_size = o.shape
    char_size = input_size - conv_size
    num_hidden = len(params["hidden"])

    n_atoms_pad = _round_up(n_atoms, 128)
    out_width = output_size * n_atoms_pad

    # Batch tile: multiple of 8 sublanes, capped so the double-buffered output
    # block stays well under the 32 MiB scoped VMEM limit (v7x-safe).
    vmem_rows = max(8, ((8 * 1024 * 1024) // (out_width * 4 * 2)) // 8 * 8)
    block_b = max(8, min(block_b_max, vmem_rows, _round_up(B, 8)))
    B_pad = _round_up(B, block_b)

    # Pre-split stock / characteristics in the wrapper (layout plumbing).
    stock = o[:, :conv_size]
    chars = o[:, conv_size:]
    if B_pad != B:
        stock = jnp.pad(stock, ((0, B_pad - B), (0, 0)))
        chars = jnp.pad(chars, ((0, B_pad - B), (0, 0)))

    # Split first-layer weight for the concat-as-split-matmul.
    W0, b0, g0, beta0 = params["hidden"][0]
    W0a, W0b = W0[:n_kernels, :], W0[n_kernels:, :]

    # Pad final-layer weight/bias so each atom segment is a full 128-lane slab.
    H = params["w_out"].shape[0]
    pad_a = n_atoms_pad - n_atoms
    W_out_p = jnp.pad(
        params["w_out"].reshape(H, output_size, n_atoms),
        ((0, 0), (0, 0), (0, pad_a))).reshape(H, out_width)
    b_out_p = jnp.pad(
        params["b_out"].reshape(1, output_size, n_atoms),
        ((0, 0), (0, 0), (0, pad_a)),
        constant_values=NEG_PAD).reshape(1, out_width)

    inputs = [stock, chars, params["conv_w"], params["conv_b"],
              W0a, W0b, b0, g0, beta0]
    for (W, b, g, beta) in params["hidden"][1:]:
        inputs += [W, b, g, beta]
    inputs += [W_out_p, b_out_p]

    def batch_spec(width):
        return pl.BlockSpec((block_b, width), lambda i: (i, 0))

    def resident_spec(arr):
        # Same block every grid step -> weight stays VMEM-resident, no re-DMA.
        return pl.BlockSpec(arr.shape, lambda i: (0, 0))

    in_specs = [batch_spec(conv_size), batch_spec(char_size)]
    in_specs += [resident_spec(a) for a in inputs[2:]]

    out = pl.pallas_call(
        _make_fused_kernel(num_hidden, output_size, n_atoms_pad),
        out_shape=jax.ShapeDtypeStruct((B_pad, out_width), jnp.float32),
        grid=(B_pad // block_b,),
        in_specs=in_specs,
        out_specs=pl.BlockSpec((block_b, out_width), lambda i: (i, 0)),
        compiler_params=pltpu.CompilerParams(
            dimension_semantics=("parallel",),
            vmem_limit_bytes=32 * 1024 * 1024),
    )(*inputs)

    # Strip batch + atom padding (wrapper-side layout plumbing only).
    return out.reshape(B_pad, output_size, n_atoms_pad)[:B, :, :n_atoms]


def c51_reference(o, params, *, conv_size, output_size, n_atoms):
    """Pure-JAX reference (mirrors the torch forward semantics)."""
    stock = o[:, :conv_size]
    chars = o[:, conv_size:]
    ss = jnp.mean(stock, axis=-1, keepdims=True) * params["conv_w"] \
        + params["conv_b"]
    x = jnp.concatenate([_selu(ss), chars], axis=-1)
    for (W, b, g, beta) in params["hidden"]:
        h = _selu(x @ W + b)
        mu = jnp.mean(h, axis=-1, keepdims=True)
        var = jnp.mean((h - mu) ** 2, axis=-1, keepdims=True)
        x = (h - mu) / jnp.sqrt(var + LN_EPS) * g + beta
    logits = x @ params["w_out"] + params["b_out"]
    B = o.shape[0]
    return jax.nn.softmax(logits.reshape(B, output_size, n_atoms), axis=-1)


def init_params(key, *, input_size, conv_size, n_kernels, hidden_sizes,
                output_size, n_atoms):
    """Deterministic synthetic parameters (shapes match the torch module)."""
    transf_in = input_size - conv_size + n_kernels

    def nxt():
        nonlocal key
        key, sub = jax.random.split(key)
        return sub

    params = {
        "conv_w": 0.3 * jax.random.normal(nxt(), (1, n_kernels), jnp.float32),
        "conv_b": 0.1 * jax.random.normal(nxt(), (1, n_kernels), jnp.float32),
        "hidden": [],
    }
    fan_in = transf_in
    for h in hidden_sizes:
        W = jax.random.normal(nxt(), (fan_in, h), jnp.float32) / jnp.sqrt(fan_in)
        b = 0.1 * jax.random.normal(nxt(), (1, h), jnp.float32)
        g = 1.0 + 0.1 * jax.random.normal(nxt(), (1, h), jnp.float32)
        beta = 0.1 * jax.random.normal(nxt(), (1, h), jnp.float32)
        params["hidden"].append((W, b, g, beta))
        fan_in = h
    out_feats = output_size * n_atoms
    params["w_out"] = jax.random.normal(
        nxt(), (fan_in, out_feats), jnp.float32) / jnp.sqrt(fan_in)
    params["b_out"] = 0.1 * jax.random.normal(nxt(), (1, out_feats), jnp.float32)
    return params


if __name__ == "__main__":
    # Small shapes consistent with the module's forward.
    B = 4
    input_size = 32
    conv_size = 16          # char_size = 16
    n_kernels = 8           # transf_in_size = 16 + 8 = 24
    hidden_sizes = [32, 32]
    output_size = 10
    n_atoms = 51

    key = jax.random.PRNGKey(0)
    key, pkey, xkey = jax.random.split(key, 3)
    params = init_params(pkey, input_size=input_size, conv_size=conv_size,
                         n_kernels=n_kernels, hidden_sizes=hidden_sizes,
                         output_size=output_size, n_atoms=n_atoms)
    x = jax.random.normal(xkey, (B, input_size), jnp.float32)

    out = c51_forward(x, params, conv_size=conv_size, n_kernels=n_kernels,
                      output_size=output_size, n_atoms=n_atoms)
    out = jax.block_until_ready(out)

    ref = c51_reference(x, params, conv_size=conv_size,
                        output_size=output_size, n_atoms=n_atoms)
    ref = jax.block_until_ready(ref)

    assert out.shape == (B, output_size, n_atoms), out.shape
    # each distribution sums to 1 (padded atom lanes contribute exactly 0)
    assert jnp.allclose(out.sum(-1), 1.0, atol=1e-4), "softmax rows must sum to 1"
    assert jnp.allclose(out, ref, atol=1e-4, rtol=1e-4), \
        f"max abs err {jnp.max(jnp.abs(out - ref))}"
    print("KERNEL_OK")
</pallas_src>

<mosaic_0001>
module attributes {stable_mosaic.version = 11 : i64} {
  func.func @kernel(%arg0: i32, %arg1: memref<8x16xf32, #tpu.memory_space<vmem>>, %arg2: memref<8x16xf32, #tpu.memory_space<vmem>>, %arg3: memref<1x8xf32, #tpu.memory_space<vmem>>, %arg4: memref<1x8xf32, #tpu.memory_space<vmem>>, %arg5: memref<8x32xf32, #tpu.memory_space<vmem>>, %arg6: memref<16x32xf32, #tpu.memory_space<vmem>>, %arg7: memref<1x32xf32, #tpu.memory_space<vmem>>, %arg8: memref<1x32xf32, #tpu.memory_space<vmem>>, %arg9: memref<1x32xf32, #tpu.memory_space<vmem>>, %arg10: memref<32x32xf32, #tpu.memory_space<vmem>>, %arg11: memref<1x32xf32, #tpu.memory_space<vmem>>, %arg12: memref<1x32xf32, #tpu.memory_space<vmem>>, %arg13: memref<1x32xf32, #tpu.memory_space<vmem>>, %arg14: memref<32x1280xf32, #tpu.memory_space<vmem>>, %arg15: memref<1x1280xf32, #tpu.memory_space<vmem>>, %arg16: memref<8x1280xf32, #tpu.memory_space<vmem>>) attributes {dimension_semantics = [#tpu.dimension_semantics<parallel>], iteration_bounds = array<i64: 1>, scalar_prefetch = 0 : i64, scratch_operands = 0 : i64, tpu.core_type = #tpu.core_type<tc>, window_params = [{transform_indices = @transform_0, window_bounds = array<i64: 8, 16>}, {transform_indices = @transform_1, window_bounds = array<i64: 8, 16>}, {pipeline_mode = #tpu.pipeline_mode<synchronous>, transform_indices = @transform_2, window_bounds = array<i64: 1, 8>}, {pipeline_mode = #tpu.pipeline_mode<synchronous>, transform_indices = @transform_3, window_bounds = array<i64: 1, 8>}, {pipeline_mode = #tpu.pipeline_mode<synchronous>, transform_indices = @transform_4, window_bounds = array<i64: 8, 32>}, {pipeline_mode = #tpu.pipeline_mode<synchronous>, transform_indices = @transform_5, window_bounds = array<i64: 16, 32>}, {pipeline_mode = #tpu.pipeline_mode<synchronous>, transform_indices = @transform_6, window_bounds = array<i64: 1, 32>}, {pipeline_mode = #tpu.pipeline_mode<synchronous>, transform_indices = @transform_7, window_bounds = array<i64: 1, 32>}, {pipeline_mode = #tpu.pipeline_mode<synchronous>, transform_indices = @transform_8, window_bounds = array<i64: 1, 32>}, {pipeline_mode = #tpu.pipeline_mode<synchronous>, transform_indices = @transform_9, window_bounds = array<i64: 32, 32>}, {pipeline_mode = #tpu.pipeline_mode<synchronous>, transform_indices = @transform_10, window_bounds = array<i64: 1, 32>}, {pipeline_mode = #tpu.pipeline_mode<synchronous>, transform_indices = @transform_11, window_bounds = array<i64: 1, 32>}, {pipeline_mode = #tpu.pipeline_mode<synchronous>, transform_indices = @transform_12, window_bounds = array<i64: 1, 32>}, {pipeline_mode = #tpu.pipeline_mode<synchronous>, transform_indices = @transform_13, window_bounds = array<i64: 32, 1280>}, {pipeline_mode = #tpu.pipeline_mode<synchronous>, transform_indices = @transform_14, window_bounds = array<i64: 1, 1280>}, {transform_indices = @transform_15, window_bounds = array<i64: 8, 1280>}]} {
    %c0 = arith.constant 0 : index
    %c0_0 = arith.constant 0 : index
    %0 = vector.load %arg1[%c0, %c0_0] : memref<8x16xf32, #tpu.memory_space<vmem>>, vector<8x16xf32>
    %c0_1 = arith.constant 0 : index
    %c0_2 = arith.constant 0 : index
    %1 = vector.load %arg2[%c0_1, %c0_2] : memref<8x16xf32, #tpu.memory_space<vmem>>, vector<8x16xf32>
    %cst = arith.constant dense<0.000000e+00> : vector<8xf32>
    %2 = vector.multi_reduction <add>, %0, %cst [1] : vector<8x16xf32> to vector<8xf32>
    %3 = vector.shape_cast %2 : vector<8xf32> to vector<8x1xf32>
    %cst_3 = arith.constant 1.600000e+01 : f32
    %4 = vector.broadcast %cst_3 : f32 to vector<8x1xf32>
    %5 = arith.divf %3, %4 : vector<8x1xf32>
    %c0_4 = arith.constant 0 : index
    %c0_5 = arith.constant 0 : index
    %6 = vector.load %arg3[%c0_4, %c0_5] : memref<1x8xf32, #tpu.memory_space<vmem>>, vector<1x8xf32>
    %7 = vector.broadcast %5 : vector<8x1xf32> to vector<8x8xf32>
    %8 = vector.broadcast %6 : vector<1x8xf32> to vector<8x8xf32>
    %9 = arith.mulf %7, %8 : vector<8x8xf32>
    %c0_6 = arith.constant 0 : index
    %c0_7 = arith.constant 0 : index
    %10 = vector.load %arg4[%c0_6, %c0_7] : memref<1x8xf32, #tpu.memory_space<vmem>>, vector<1x8xf32>
    %11 = vector.broadcast %10 : vector<1x8xf32> to vector<8x8xf32>
    %12 = arith.addf %9, %11 : vector<8x8xf32>
    %cst_8 = arith.constant 0.000000e+00 : f32
    %13 = vector.broadcast %cst_8 : f32 to vector<8x8xf32>
    %14 = arith.cmpf ogt, %12, %13 : vector<8x8xf32>
    %cst_9 = arith.constant 0.000000e+00 : f32
    %15 = vector.broadcast %cst_9 : f32 to vector<8x8xf32>
    %16 = arith.minimumf %12, %15 : vector<8x8xf32>
    %17 = math.exp %16 : vector<8x8xf32>
    %cst_10 = arith.constant 1.000000e+00 : f32
    %18 = vector.broadcast %cst_10 : f32 to vector<8x8xf32>
    %19 = arith.subf %17, %18 : vector<8x8xf32>
    %cst_11 = arith.constant 1.67326319 : f32
    %20 = vector.broadcast %cst_11 : f32 to vector<8x8xf32>
    %21 = arith.mulf %20, %19 : vector<8x8xf32>
    %22 = arith.select %14, %12, %21 : vector<8x8xi1>, vector<8x8xf32>
    %cst_12 = arith.constant 1.05070102 : f32
    %23 = vector.broadcast %cst_12 : f32 to vector<8x8xf32>
    %24 = arith.mulf %23, %22 : vector<8x8xf32>
    %c0_13 = arith.constant 0 : index
    %c0_14 = arith.constant 0 : index
    %25 = vector.load %arg5[%c0_13, %c0_14] : memref<8x32xf32, #tpu.memory_space<vmem>>, vector<8x32xf32>
    %cst_15 = arith.constant dense<0.000000e+00> : vector<8x32xf32>
    %26 = tpu.matmul %24, %25, %cst_15 {dimension_numbers = #tpu.dot_dimension_numbers<[1], [0], [0], [1], [0, 0, 1, 1], [], []>} : vector<8x8xf32>, vector<8x32xf32>, vector<8x32xf32> -> vector<8x32xf32>
    %c0_16 = arith.constant 0 : index
    %c0_17 = arith.constant 0 : index
    %27 = vector.load %arg6[%c0_16, %c0_17] : memref<16x32xf32, #tpu.memory_space<vmem>>, vector<16x32xf32>
    %cst_18 = arith.constant dense<0.000000e+00> : vector<8x32xf32>
    %28 = tpu.matmul %1, %27, %cst_18 {dimension_numbers = #tpu.dot_dimension_numbers<[1], [0], [0], [1], [0, 0, 1, 1], [], []>} : vector<8x16xf32>, vector<16x32xf32>, vector<8x32xf32> -> vector<8x32xf32>
    %29 = arith.addf %26, %28 : vector<8x32xf32>
    %c0_19 = arith.constant 0 : index
    %c0_20 = arith.constant 0 : index
    %30 = vector.load %arg7[%c0_19, %c0_20] : memref<1x32xf32, #tpu.memory_space<vmem>>, vector<1x32xf32>
    %31 = vector.broadcast %30 : vector<1x32xf32> to vector<8x32xf32>
    %32 = arith.addf %29, %31 : vector<8x32xf32>
    %cst_21 = arith.constant 0.000000e+00 : f32
    %33 = vector.broadcast %cst_21 : f32 to vector<8x32xf32>
    %34 = arith.cmpf ogt, %32, %33 : vector<8x32xf32>
    %cst_22 = arith.constant 0.000000e+00 : f32
    %35 = vector.broadcast %cst_22 : f32 to vector<8x32xf32>
    %36 = arith.minimumf %32, %35 : vector<8x32xf32>
    %37 = math.exp %36 : vector<8x32xf32>
    %cst_23 = arith.constant 1.000000e+00 : f32
    %38 = vector.broadcast %cst_23 : f32 to vector<8x32xf32>
    %39 = arith.subf %37, %38 : vector<8x32xf32>
    %cst_24 = arith.constant 1.67326319 : f32
    %40 = vector.broadcast %cst_24 : f32 to vector<8x32xf32>
    %41 = arith.mulf %40, %39 : vector<8x32xf32>
    %42 = arith.select %34, %32, %41 : vector<8x32xi1>, vector<8x32xf32>
    %cst_25 = arith.constant 1.05070102 : f32
    %43 = vector.broadcast %cst_25 : f32 to vector<8x32xf32>
    %44 = arith.mulf %43, %42 : vector<8x32xf32>
    %c0_26 = arith.constant 0 : index
    %c0_27 = arith.constant 0 : index
    %45 = vector.load %arg8[%c0_26, %c0_27] : memref<1x32xf32, #tpu.memory_space<vmem>>, vector<1x32xf32>
    %c0_28 = arith.constant 0 : index
    %c0_29 = arith.constant 0 : index
    %46 = vector.load %arg9[%c0_28, %c0_29] : memref<1x32xf32, #tpu.memory_space<vmem>>, vector<1x32xf32>
    %cst_30 = arith.constant dense<0.000000e+00> : vector<8xf32>
    %47 = vector.multi_reduction <add>, %44, %cst_30 [1] : vector<8x32xf32> to vector<8xf32>
    %48 = vector.shape_cast %47 : vector<8xf32> to vector<8x1xf32>
    %cst_31 = arith.constant 3.200000e+01 : f32
    %49 = vector.broadcast %cst_31 : f32 to vector<8x1xf32>
    %50 = arith.divf %48, %49 : vector<8x1xf32>
    %51 = vector.broadcast %50 : vector<8x1xf32> to vector<8x32xf32>
    %52 = arith.subf %44, %51 : vector<8x32xf32>
    %53 = arith.mulf %52, %52 : vector<8x32xf32>
    %cst_32 = arith.constant dense<0.000000e+00> : vector<8xf32>
    %54 = vector.multi_reduction <add>, %53, %cst_32 [1] : vector<8x32xf32> to vector<8xf32>
    %55 = vector.shape_cast %54 : vector<8xf32> to vector<8x1xf32>
    %cst_33 = arith.constant 3.200000e+01 : f32
    %56 = vector.broadcast %cst_33 : f32 to vector<8x1xf32>
    %57 = arith.divf %55, %56 : vector<8x1xf32>
    %58 = vector.broadcast %50 : vector<8x1xf32> to vector<8x32xf32>
    %59 = arith.subf %44, %58 : vector<8x32xf32>
    %cst_34 = arith.constant 9.99999974E-6 : f32
    %60 = vector.broadcast %cst_34 : f32 to vector<8x1xf32>
    %61 = arith.addf %57, %60 : vector<8x1xf32>
    %62 = math.rsqrt %61 : vector<8x1xf32>
    %63 = vector.broadcast %62 : vector<8x1xf32> to vector<8x32xf32>
    %64 = arith.mulf %59, %63 : vector<8x32xf32>
    %65 = vector.broadcast %45 : vector<1x32xf32> to vector<8x32xf32>
    %66 = arith.mulf %64, %65 : vector<8x32xf32>
    %67 = vector.broadcast %46 : vector<1x32xf32> to vector<8x32xf32>
    %68 = arith.addf %66, %67 : vector<8x32xf32>
    %c0_35 = arith.constant 0 : index
    %c0_36 = arith.constant 0 : index
    %69 = vector.load %arg10[%c0_35, %c0_36] : memref<32x32xf32, #tpu.memory_space<vmem>>, vector<32x32xf32>
    %cst_37 = arith.constant dense<0.000000e+00> : vector<8x32xf32>
    %70 = tpu.matmul %68, %69, %cst_37 {dimension_numbers = #tpu.dot_dimension_numbers<[1], [0], [0], [1], [0, 0, 1, 1], [], []>} : vector<8x32xf32>, vector<32x32xf32>, vector<8x32xf32> -> vector<8x32xf32>
    %c0_38 = arith.constant 0 : index
    %c0_39 = arith.constant 0 : index
    %71 = vector.load %arg11[%c0_38, %c0_39] : memref<1x32xf32, #tpu.memory_space<vmem>>, vector<1x32xf32>
    %72 = vector.broadcast %71 : vector<1x32xf32> to vector<8x32xf32>
    %73 = arith.addf %70, %72 : vector<8x32xf32>
    %cst_40 = arith.constant 0.000000e+00 : f32
    %74 = vector.broadcast %cst_40 : f32 to vector<8x32xf32>
    %75 = arith.cmpf ogt, %73, %74 : vector<8x32xf32>
    %cst_41 = arith.constant 0.000000e+00 : f32
    %76 = vector.broadcast %cst_41 : f32 to vector<8x32xf32>
    %77 = arith.minimumf %73, %76 : vector<8x32xf32>
    %78 = math.exp %77 : vector<8x32xf32>
    %cst_42 = arith.constant 1.000000e+00 : f32
    %79 = vector.broadcast %cst_42 : f32 to vector<8x32xf32>
    %80 = arith.subf %78, %79 : vector<8x32xf32>
    %cst_43 = arith.constant 1.67326319 : f32
    %81 = vector.broadcast %cst_43 : f32 to vector<8x32xf32>
    %82 = arith.mulf %81, %80 : vector<8x32xf32>
    %83 = arith.select %75, %73, %82 : vector<8x32xi1>, vector<8x32xf32>
    %cst_44 = arith.constant 1.05070102 : f32
    %84 = vector.broadcast %cst_44 : f32 to vector<8x32xf32>
    %85 = arith.mulf %84, %83 : vector<8x32xf32>
    %c0_45 = arith.constant 0 : index
    %c0_46 = arith.constant 0 : index
    %86 = vector.load %arg12[%c0_45, %c0_46] : memref<1x32xf32, #tpu.memory_space<vmem>>, vector<1x32xf32>
    %c0_47 = arith.constant 0 : index
    %c0_48 = arith.constant 0 : index
    %87 = vector.load %arg13[%c0_47, %c0_48] : memref<1x32xf32, #tpu.memory_space<vmem>>, vector<1x32xf32>
    %cst_49 = arith.constant dense<0.000000e+00> : vector<8xf32>
    %88 = vector.multi_reduction <add>, %85, %cst_49 [1] : vector<8x32xf32> to vector<8xf32>
    %89 = vector.shape_cast %88 : vector<8xf32> to vector<8x1xf32>
    %cst_50 = arith.constant 3.200000e+01 : f32
    %90 = vector.broadcast %cst_50 : f32 to vector<8x1xf32>
    %91 = arith.divf %89, %90 : vector<8x1xf32>
    %92 = vector.broadcast %91 : vector<8x1xf32> to vector<8x32xf32>
    %93 = arith.subf %85, %92 : vector<8x32xf32>
    %94 = arith.mulf %93, %93 : vector<8x32xf32>
    %cst_51 = arith.constant dense<0.000000e+00> : vector<8xf32>
    %95 = vector.multi_reduction <add>, %94, %cst_51 [1] : vector<8x32xf32> to vector<8xf32>
    %96 = vector.shape_cast %95 : vector<8xf32> to vector<8x1xf32>
    %cst_52 = arith.constant 3.200000e+01 : f32
    %97 = vector.broadcast %cst_52 : f32 to vector<8x1xf32>
    %98 = arith.divf %96, %97 : vector<8x1xf32>
    %99 = vector.broadcast %91 : vector<8x1xf32> to vector<8x32xf32>
    %100 = arith.subf %85, %99 : vector<8x32xf32>
    %cst_53 = arith.constant 9.99999974E-6 : f32
    %101 = vector.broadcast %cst_53 : f32 to vector<8x1xf32>
    %102 = arith.addf %98, %101 : vector<8x1xf32>
    %103 = math.rsqrt %102 : vector<8x1xf32>
    %104 = vector.broadcast %103 : vector<8x1xf32> to vector<8x32xf32>
    %105 = arith.mulf %100, %104 : vector<8x32xf32>
    %106 = vector.broadcast %86 : vector<1x32xf32> to vector<8x32xf32>
    %107 = arith.mulf %105, %106 : vector<8x32xf32>
    %108 = vector.broadcast %87 : vector<1x32xf32> to vector<8x32xf32>
    %109 = arith.addf %107, %108 : vector<8x32xf32>
    %c0_54 = arith.constant 0 : index
    %c0_55 = arith.constant 0 : index
    %110 = vector.load %arg14[%c0_54, %c0_55] : memref<32x1280xf32, #tpu.memory_space<vmem>>, vector<32x1280xf32>
    %cst_56 = arith.constant dense<0.000000e+00> : vector<8x1280xf32>
    %111 = tpu.matmul %109, %110, %cst_56 {dimension_numbers = #tpu.dot_dimension_numbers<[1], [0], [0], [1], [0, 0, 1, 1], [], []>} : vector<8x32xf32>, vector<32x1280xf32>, vector<8x1280xf32> -> vector<8x1280xf32>
    %c0_57 = arith.constant 0 : index
    %c0_58 = arith.constant 0 : index
    %112 = vector.load %arg15[%c0_57, %c0_58] : memref<1x1280xf32, #tpu.memory_space<vmem>>, vector<1x1280xf32>
    %113 = vector.broadcast %112 : vector<1x1280xf32> to vector<8x1280xf32>
    %114 = arith.addf %111, %113 : vector<8x1280xf32>
    %115 = vector.extract_strided_slice %114 {offsets = [0, 0], sizes = [8, 128], strides = [1, 1]} : vector<8x1280xf32> to vector<8x128xf32>
    %cst_59 = arith.constant dense<0xFF800000> : vector<8xf32>
    %116 = vector.multi_reduction <maximumf>, %115, %cst_59 [1] : vector<8x128xf32> to vector<8xf32>
    %117 = vector.shape_cast %116 : vector<8xf32> to vector<8x1xf32>
    %118 = vector.broadcast %117 : vector<8x1xf32> to vector<8x128xf32>
    %119 = arith.subf %115, %118 : vector<8x128xf32>
    %120 = math.exp %119 : vector<8x128xf32>
    %cst_60 = arith.constant dense<0.000000e+00> : vector<8xf32>
    %121 = vector.multi_reduction <add>, %120, %cst_60 [1] : vector<8x128xf32> to vector<8xf32>
    %122 = vector.shape_cast %121 : vector<8xf32> to vector<8x1xf32>
    %123 = tpu.reciprocal %122 {approx = true} : vector<8x1xf32> -> vector<8x1xf32>
    %124 = arith.mulf %122, %123 : vector<8x1xf32>
    %cst_61 = arith.constant 2.000000e+00 : f32
    %125 = vector.broadcast %cst_61 : f32 to vector<8x1xf32>
    %126 = arith.subf %125, %124 : vector<8x1xf32>
    %127 = arith.mulf %123, %126 : vector<8x1xf32>
    %128 = vector.broadcast %127 : vector<8x1xf32> to vector<8x128xf32>
    %129 = arith.mulf %120, %128 : vector<8x128xf32>
    %c0_62 = arith.constant 0 : index
    %c0_63 = arith.constant 0 : index
    %130 = vector.load %arg16[%c0_62, %c0_63] : memref<8x1280xf32, #tpu.memory_space<vmem>>, vector<8x128xf32>
    tpu.vector_store %arg16[%c0_62, %c0_63], %129 {strides = array<i32>} : memref<8x1280xf32, #tpu.memory_space<vmem>>, vector<8x128xf32>,
    %131 = vector.extract_strided_slice %114 {offsets = [0, 128], sizes = [8, 128], strides = [1, 1]} : vector<8x1280xf32> to vector<8x128xf32>
    %cst_64 = arith.constant dense<0xFF800000> : vector<8xf32>
    %132 = vector.multi_reduction <maximumf>, %131, %cst_64 [1] : vector<8x128xf32> to vector<8xf32>
    %133 = vector.shape_cast %132 : vector<8xf32> to vector<8x1xf32>
    %134 = vector.broadcast %133 : vector<8x1xf32> to vector<8x128xf32>
    %135 = arith.subf %131, %134 : vector<8x128xf32>
    %136 = math.exp %135 : vector<8x128xf32>
    %cst_65 = arith.constant dense<0.000000e+00> : vector<8xf32>
    %137 = vector.multi_reduction <add>, %136, %cst_65 [1] : vector<8x128xf32> to vector<8xf32>
    %138 = vector.shape_cast %137 : vector<8xf32> to vector<8x1xf32>
    %139 = tpu.reciprocal %138 {approx = true} : vector<8x1xf32> -> vector<8x1xf32>
    %140 = arith.mulf %138, %139 : vector<8x1xf32>
    %cst_66 = arith.constant 2.000000e+00 : f32
    %141 = vector.broadcast %cst_66 : f32 to vector<8x1xf32>
    %142 = arith.subf %141, %140 : vector<8x1xf32>
    %143 = arith.mulf %139, %142 : vector<8x1xf32>
    %144 = vector.broadcast %143 : vector<8x1xf32> to vector<8x128xf32>
    %145 = arith.mulf %136, %144 : vector<8x128xf32>
    %c0_67 = arith.constant 0 : index
    %c128 = arith.constant 128 : index
    %146 = vector.load %arg16[%c0_67, %c128] : memref<8x1280xf32, #tpu.memory_space<vmem>>, vector<8x128xf32>
    tpu.vector_store %arg16[%c0_67, %c128], %145 {strides = array<i32>} : memref<8x1280xf32, #tpu.memory_space<vmem>>, vector<8x128xf32>,
    %147 = vector.extract_strided_slice %114 {offsets = [0, 256], sizes = [8, 128], strides = [1, 1]} : vector<8x1280xf32> to vector<8x128xf32>
    %cst_68 = arith.constant dense<0xFF800000> : vector<8xf32>
    %148 = vector.multi_reduction <maximumf>, %147, %cst_68 [1] : vector<8x128xf32> to vector<8xf32>
    %149 = vector.shape_cast %148 : vector<8xf32> to vector<8x1xf32>
    %150 = vector.broadcast %149 : vector<8x1xf32> to vector<8x128xf32>
    %151 = arith.subf %147, %150 : vector<8x128xf32>
    %152 = math.exp %151 : vector<8x128xf32>
    %cst_69 = arith.constant dense<0.000000e+00> : vector<8xf32>
    %153 = vector.multi_reduction <add>, %152, %cst_69 [1] : vector<8x128xf32> to vector<8xf32>
    %154 = vector.shape_cast %153 : vector<8xf32> to vector<8x1xf32>
    %155 = tpu.reciprocal %154 {approx = true} : vector<8x1xf32> -> vector<8x1xf32>
    %156 = arith.mulf %154, %155 : vector<8x1xf32>
    %cst_70 = arith.constant 2.000000e+00 : f32
    %157 = vector.broadcast %cst_70 : f32 to vector<8x1xf32>
    %158 = arith.subf %157, %156 : vector<8x1xf32>
    %159 = arith.mulf %155, %158 : vector<8x1xf32>
    %160 = vector.broadcast %159 : vector<8x1xf32> to vector<8x128xf32>
    %161 = arith.mulf %152, %160 : vector<8x128xf32>
    %c0_71 = arith.constant 0 : index
    %c256 = arith.constant 256 : index
    %162 = vector.load %arg16[%c0_71, %c256] : memref<8x1280xf32, #tpu.memory_space<vmem>>, vector<8x128xf32>
    tpu.vector_store %arg16[%c0_71, %c256], %161 {strides = array<i32>} : memref<8x1280xf32, #tpu.memory_space<vmem>>, vector<8x128xf32>,
    %163 = vector.extract_strided_slice %114 {offsets = [0, 384], sizes = [8, 128], strides = [1, 1]} : vector<8x1280xf32> to vector<8x128xf32>
    %cst_72 = arith.constant dense<0xFF800000> : vector<8xf32>
    %164 = vector.multi_reduction <maximumf>, %163, %cst_72 [1] : vector<8x128xf32> to vector<8xf32>
    %165 = vector.shape_cast %164 : vector<8xf32> to vector<8x1xf32>
    %166 = vector.broadcast %165 : vector<8x1xf32> to vector<8x128xf32>
    %167 = arith.subf %163, %166 : vector<8x128xf32>
    %168 = math.exp %167 : vector<8x128xf32>
    %cst_73 = arith.constant dense<0.000000e+00> : vector<8xf32>
    %169 = vector.multi_reduction <add>, %168, %cst_73 [1] : vector<8x128xf32> to vector<8xf32>
    %170 = vector.shape_cast %169 : vector<8xf32> to vector<8x1xf32>
    %171 = tpu.reciprocal %170 {approx = true} : vector<8x1xf32> -> vector<8x1xf32>
    %172 = arith.mulf %170, %171 : vector<8x1xf32>
    %cst_74 = arith.constant 2.000000e+00 : f32
    %173 = vector.broadcast %cst_74 : f32 to vector<8x1xf32>
    %174 = arith.subf %173, %172 : vector<8x1xf32>
    %175 = arith.mulf %171, %174 : vector<8x1xf32>
    %176 = vector.broadcast %175 : vector<8x1xf32> to vector<8x128xf32>
    %177 = arith.mulf %168, %176 : vector<8x128xf32>
    %c0_75 = arith.constant 0 : index
    %c384 = arith.constant 384 : index
    %178 = vector.load %arg16[%c0_75, %c384] : memref<8x1280xf32, #tpu.memory_space<vmem>>, vector<8x128xf32>
    tpu.vector_store %arg16[%c0_75, %c384], %177 {strides = array<i32>} : memref<8x1280xf32, #tpu.memory_space<vmem>>, vector<8x128xf32>,
    %179 = vector.extract_strided_slice %114 {offsets = [0, 512], sizes = [8, 128], strides = [1, 1]} : vector<8x1280xf32> to vector<8x128xf32>
    %cst_76 = arith.constant dense<0xFF800000> : vector<8xf32>
    %180 = vector.multi_reduction <maximumf>, %179, %cst_76 [1] : vector<8x128xf32> to vector<8xf32>
    %181 = vector.shape_cast %180 : vector<8xf32> to vector<8x1xf32>
    %182 = vector.broadcast %181 : vector<8x1xf32> to vector<8x128xf32>
    %183 = arith.subf %179, %182 : vector<8x128xf32>
    %184 = math.exp %183 : vector<8x128xf32>
    %cst_77 = arith.constant dense<0.000000e+00> : vector<8xf32>
    %185 = vector.multi_reduction <add>, %184, %cst_77 [1] : vector<8x128xf32> to vector<8xf32>
    %186 = vector.shape_cast %185 : vector<8xf32> to vector<8x1xf32>
    %187 = tpu.reciprocal %186 {approx = true} : vector<8x1xf32> -> vector<8x1xf32>
    %188 = arith.mulf %186, %187 : vector<8x1xf32>
    %cst_78 = arith.constant 2.000000e+00 : f32
    %189 = vector.broadcast %cst_78 : f32 to vector<8x1xf32>
    %190 = arith.subf %189, %188 : vector<8x1xf32>
    %191 = arith.mulf %187, %190 : vector<8x1xf32>
    %192 = vector.broadcast %191 : vector<8x1xf32> to vector<8x128xf32>
    %193 = arith.mulf %184, %192 : vector<8x128xf32>
    %c0_79 = arith.constant 0 : index
    %c512 = arith.constant 512 : index
    %194 = vector.load %arg16[%c0_79, %c512] : memref<8x1280xf32, #tpu.memory_space<vmem>>, vector<8x128xf32>
    tpu.vector_store %arg16[%c0_79, %c512], %193 {strides = array<i32>} : memref<8x1280xf32, #tpu.memory_space<vmem>>, vector<8x128xf32>,
    %195 = vector.extract_strided_slice %114 {offsets = [0, 640], sizes = [8, 128], strides = [1, 1]} : vector<8x1280xf32> to vector<8x128xf32>
    %cst_80 = arith.constant dense<0xFF800000> : vector<8xf32>
    %196 = vector.multi_reduction <maximumf>, %195, %cst_80 [1] : vector<8x128xf32> to vector<8xf32>
    %197 = vector.shape_cast %196 : vector<8xf32> to vector<8x1xf32>
    %198 = vector.broadcast %197 : vector<8x1xf32> to vector<8x128xf32>
    %199 = arith.subf %195, %198 : vector<8x128xf32>
    %200 = math.exp %199 : vector<8x128xf32>
    %cst_81 = arith.constant dense<0.000000e+00> : vector<8xf32>
    %201 = vector.multi_reduction <add>, %200, %cst_81 [1] : vector<8x128xf32> to vector<8xf32>
    %202 = vector.shape_cast %201 : vector<8xf32> to vector<8x1xf32>
    %203 = tpu.reciprocal %202 {approx = true} : vector<8x1xf32> -> vector<8x1xf32>
    %204 = arith.mulf %202, %203 : vector<8x1xf32>
    %cst_82 = arith.constant 2.000000e+00 : f32
    %205 = vector.broadcast %cst_82 : f32 to vector<8x1xf32>
    %206 = arith.subf %205, %204 : vector<8x1xf32>
    %207 = arith.mulf %203, %206 : vector<8x1xf32>
    %208 = vector.broadcast %207 : vector<8x1xf32> to vector<8x128xf32>
    %209 = arith.mulf %200, %208 : vector<8x128xf32>
    %c0_83 = arith.constant 0 : index
    %c640 = arith.constant 640 : index
    %210 = vector.load %arg16[%c0_83, %c640] : memref<8x1280xf32, #tpu.memory_space<vmem>>, vector<8x128xf32>
    tpu.vector_store %arg16[%c0_83, %c640], %209 {strides = array<i32>} : memref<8x1280xf32, #tpu.memory_space<vmem>>, vector<8x128xf32>,
    %211 = vector.extract_strided_slice %114 {offsets = [0, 768], sizes = [8, 128], strides = [1, 1]} : vector<8x1280xf32> to vector<8x128xf32>
    %cst_84 = arith.constant dense<0xFF800000> : vector<8xf32>
    %212 = vector.multi_reduction <maximumf>, %211, %cst_84 [1] : vector<8x128xf32> to vector<8xf32>
    %213 = vector.shape_cast %212 : vector<8xf32> to vector<8x1xf32>
    %214 = vector.broadcast %213 : vector<8x1xf32> to vector<8x128xf32>
    %215 = arith.subf %211, %214 : vector<8x128xf32>
    %216 = math.exp %215 : vector<8x128xf32>
    %cst_85 = arith.constant dense<0.000000e+00> : vector<8xf32>
    %217 = vector.multi_reduction <add>, %216, %cst_85 [1] : vector<8x128xf32> to vector<8xf32>
    %218 = vector.shape_cast %217 : vector<8xf32> to vector<8x1xf32>
    %219 = tpu.reciprocal %218 {approx = true} : vector<8x1xf32> -> vector<8x1xf32>
    %220 = arith.mulf %218, %219 : vector<8x1xf32>
    %cst_86 = arith.constant 2.000000e+00 : f32
    %221 = vector.broadcast %cst_86 : f32 to vector<8x1xf32>
    %222 = arith.subf %221, %220 : vector<8x1xf32>
    %223 = arith.mulf %219, %222 : vector<8x1xf32>
    %224 = vector.broadcast %223 : vector<8x1xf32> to vector<8x128xf32>
    %225 = arith.mulf %216, %224 : vector<8x128xf32>
    %c0_87 = arith.constant 0 : index
    %c768 = arith.constant 768 : index
    %226 = vector.load %arg16[%c0_87, %c768] : memref<8x1280xf32, #tpu.memory_space<vmem>>, vector<8x128xf32>
    tpu.vector_store %arg16[%c0_87, %c768], %225 {strides = array<i32>} : memref<8x1280xf32, #tpu.memory_space<vmem>>, vector<8x128xf32>,
    %227 = vector.extract_strided_slice %114 {offsets = [0, 896], sizes = [8, 128], strides = [1, 1]} : vector<8x1280xf32> to vector<8x128xf32>
    %cst_88 = arith.constant dense<0xFF800000> : vector<8xf32>
    %228 = vector.multi_reduction <maximumf>, %227, %cst_88 [1] : vector<8x128xf32> to vector<8xf32>
    %229 = vector.shape_cast %228 : vector<8xf32> to vector<8x1xf32>
    %230 = vector.broadcast %229 : vector<8x1xf32> to vector<8x128xf32>
    %231 = arith.subf %227, %230 : vector<8x128xf32>
    %232 = math.exp %231 : vector<8x128xf32>
    %cst_89 = arith.constant dense<0.000000e+00> : vector<8xf32>
    %233 = vector.multi_reduction <add>, %232, %cst_89 [1] : vector<8x128xf32> to vector<8xf32>
    %234 = vector.shape_cast %233 : vector<8xf32> to vector<8x1xf32>
    %235 = tpu.reciprocal %234 {approx = true} : vector<8x1xf32> -> vector<8x1xf32>
    %236 = arith.mulf %234, %235 : vector<8x1xf32>
    %cst_90 = arith.constant 2.000000e+00 : f32
    %237 = vector.broadcast %cst_90 : f32 to vector<8x1xf32>
    %238 = arith.subf %237, %236 : vector<8x1xf32>
    %239 = arith.mulf %235, %238 : vector<8x1xf32>
    %240 = vector.broadcast %239 : vector<8x1xf32> to vector<8x128xf32>
    %241 = arith.mulf %232, %240 : vector<8x128xf32>
    %c0_91 = arith.constant 0 : index
    %c896 = arith.constant 896 : index
    %242 = vector.load %arg16[%c0_91, %c896] : memref<8x1280xf32, #tpu.memory_space<vmem>>, vector<8x128xf32>
    tpu.vector_store %arg16[%c0_91, %c896], %241 {strides = array<i32>} : memref<8x1280xf32, #tpu.memory_space<vmem>>, vector<8x128xf32>,
    %243 = vector.extract_strided_slice %114 {offsets = [0, 1024], sizes = [8, 128], strides = [1, 1]} : vector<8x1280xf32> to vector<8x128xf32>
    %cst_92 = arith.constant dense<0xFF800000> : vector<8xf32>
    %244 = vector.multi_reduction <maximumf>, %243, %cst_92 [1] : vector<8x128xf32> to vector<8xf32>
    %245 = vector.shape_cast %244 : vector<8xf32> to vector<8x1xf32>
    %246 = vector.broadcast %245 : vector<8x1xf32> to vector<8x128xf32>
    %247 = arith.subf %243, %246 : vector<8x128xf32>
    %248 = math.exp %247 : vector<8x128xf32>
    %cst_93 = arith.constant dense<0.000000e+00> : vector<8xf32>
    %249 = vector.multi_reduction <add>, %248, %cst_93 [1] : vector<8x128xf32> to vector<8xf32>
    %250 = vector.shape_cast %249 : vector<8xf32> to vector<8x1xf32>
    %251 = tpu.reciprocal %250 {approx = true} : vector<8x1xf32> -> vector<8x1xf32>
    %252 = arith.mulf %250, %251 : vector<8x1xf32>
    %cst_94 = arith.constant 2.000000e+00 : f32
    %253 = vector.broadcast %cst_94 : f32 to vector<8x1xf32>
    %254 = arith.subf %253, %252 : vector<8x1xf32>
    %255 = arith.mulf %251, %254 : vector<8x1xf32>
    %256 = vector.broadcast %255 : vector<8x1xf32> to vector<8x128xf32>
    %257 = arith.mulf %248, %256 : vector<8x128xf32>
    %c0_95 = arith.constant 0 : index
    %c1024 = arith.constant 1024 : index
    %258 = vector.load %arg16[%c0_95, %c1024] : memref<8x1280xf32, #tpu.memory_space<vmem>>, vector<8x128xf32>
    tpu.vector_store %arg16[%c0_95, %c1024], %257 {strides = array<i32>} : memref<8x1280xf32, #tpu.memory_space<vmem>>, vector<8x128xf32>,
    %259 = vector.extract_strided_slice %114 {offsets = [0, 1152], sizes = [8, 128], strides = [1, 1]} : vector<8x1280xf32> to vector<8x128xf32>
    %cst_96 = arith.constant dense<0xFF800000> : vector<8xf32>
    %260 = vector.multi_reduction <maximumf>, %259, %cst_96 [1] : vector<8x128xf32> to vector<8xf32>
    %261 = vector.shape_cast %260 : vector<8xf32> to vector<8x1xf32>
    %262 = vector.broadcast %261 : vector<8x1xf32> to vector<8x128xf32>
    %263 = arith.subf %259, %262 : vector<8x128xf32>
    %264 = math.exp %263 : vector<8x128xf32>
    %cst_97 = arith.constant dense<0.000000e+00> : vector<8xf32>
    %265 = vector.multi_reduction <add>, %264, %cst_97 [1] : vector<8x128xf32> to vector<8xf32>
    %266 = vector.shape_cast %265 : vector<8xf32> to vector<8x1xf32>
    %267 = tpu.reciprocal %266 {approx = true} : vector<8x1xf32> -> vector<8x1xf32>
    %268 = arith.mulf %266, %267 : vector<8x1xf32>
    %cst_98 = arith.constant 2.000000e+00 : f32
    %269 = vector.broadcast %cst_98 : f32 to vector<8x1xf32>
    %270 = arith.subf %269, %268 : vector<8x1xf32>
    %271 = arith.mulf %267, %270 : vector<8x1xf32>
    %272 = vector.broadcast %271 : vector<8x1xf32> to vector<8x128xf32>
    %273 = arith.mulf %264, %272 : vector<8x128xf32>
    %c0_99 = arith.constant 0 : index
    %c1152 = arith.constant 1152 : index
    %274 = vector.load %arg16[%c0_99, %c1152] : memref<8x1280xf32, #tpu.memory_space<vmem>>, vector<8x128xf32>
    tpu.vector_store %arg16[%c0_99, %c1152], %273 {strides = array<i32>} : memref<8x1280xf32, #tpu.memory_space<vmem>>, vector<8x128xf32>,
    return
  }
  func.func @transform_0(%arg0: i32) -> (i32, i32) {
    %c0_i32 = arith.constant 0 : i32
    %c0_i32_0 = arith.constant 0 : i32
    return %arg0, %c0_i32 : i32, i32
  }
  func.func @transform_1(%arg0: i32) -> (i32, i32) {
    %c0_i32 = arith.constant 0 : i32
    %c0_i32_0 = arith.constant 0 : i32
    return %arg0, %c0_i32 : i32, i32
  }
  func.func @transform_2(%arg0: i32) -> (i32, i32) {
    %c0_i32 = arith.constant 0 : i32
    %c0_i32_0 = arith.constant 0 : i32
    %c0_i32_1 = arith.constant 0 : i32
    return %c0_i32, %c0_i32_0 : i32, i32
  }
  func.func @transform_3(%arg0: i32) -> (i32, i32) {
    %c0_i32 = arith.constant 0 : i32
    %c0_i32_0 = arith.constant 0 : i32
    %c0_i32_1 = arith.constant 0 : i32
    return %c0_i32, %c0_i32_0 : i32, i32
  }
  func.func @transform_4(%arg0: i32) -> (i32, i32) {
    %c0_i32 = arith.constant 0 : i32
    %c0_i32_0 = arith.constant 0 : i32
    %c0_i32_1 = arith.constant 0 : i32
    return %c0_i32, %c0_i32_0 : i32, i32
  }
  func.func @transform_5(%arg0: i32) -> (i32, i32) {
    %c0_i32 = arith.constant 0 : i32
    %c0_i32_0 = arith.constant 0 : i32
    %c0_i32_1 = arith.constant 0 : i32
    return %c0_i32, %c0_i32_0 : i32, i32
  }
  func.func @transform_6(%arg0: i32) -> (i32, i32) {
    %c0_i32 = arith.constant 0 : i32
    %c0_i32_0 = arith.constant 0 : i32
    %c0_i32_1 = arith.constant 0 : i32
    return %c0_i32, %c0_i32_0 : i32, i32
  }
  func.func @transform_7(%arg0: i32) -> (i32, i32) {
    %c0_i32 = arith.constant 0 : i32
    %c0_i32_0 = arith.constant 0 : i32
    %c0_i32_1 = arith.constant 0 : i32
    return %c0_i32, %c0_i32_0 : i32, i32
  }
  func.func @transform_8(%arg0: i32) -> (i32, i32) {
    %c0_i32 = arith.constant 0 : i32
    %c0_i32_0 = arith.constant 0 : i32
    %c0_i32_1 = arith.constant 0 : i32
    return %c0_i32, %c0_i32_0 : i32, i32
  }
  func.func @transform_9(%arg0: i32) -> (i32, i32) {
    %c0_i32 = arith.constant 0 : i32
    %c0_i32_0 = arith.constant 0 : i32
    %c0_i32_1 = arith.constant 0 : i32
    return %c0_i32, %c0_i32_0 : i32, i32
  }
  func.func @transform_10(%arg0: i32) -> (i32, i32) {
    %c0_i32 = arith.constant 0 : i32
    %c0_i32_0 = arith.constant 0 : i32
    %c0_i32_1 = arith.constant 0 : i32
    return %c0_i32, %c0_i32_0 : i32, i32
  }
  func.func @transform_11(%arg0: i32) -> (i32, i32) {
    %c0_i32 = arith.constant 0 : i32
    %c0_i32_0 = arith.constant 0 : i32
    %c0_i32_1 = arith.constant 0 : i32
    return %c0_i32, %c0_i32_0 : i32, i32
  }
  func.func @transform_12(%arg0: i32) -> (i32, i32) {
    %c0_i32 = arith.constant 0 : i32
    %c0_i32_0 = arith.constant 0 : i32
    %c0_i32_1 = arith.constant 0 : i32
    return %c0_i32, %c0_i32_0 : i32, i32
  }
  func.func @transform_13(%arg0: i32) -> (i32, i32) {
    %c0_i32 = arith.constant 0 : i32
    %c0_i32_0 = arith.constant 0 : i32
    %c0_i32_1 = arith.constant 0 : i32
    return %c0_i32, %c0_i32_0 : i32, i32
  }
  func.func @transform_14(%arg0: i32) -> (i32, i32) {
    %c0_i32 = arith.constant 0 : i32
    %c0_i32_0 = arith.constant 0 : i32
    %c0_i32_1 = arith.constant 0 : i32
    return %c0_i32, %c0_i32_0 : i32, i32
  }
  func.func @transform_15(%arg0: i32) -> (i32, i32) {
    %c0_i32 = arith.constant 0 : i32
    %c0_i32_0 = arith.constant 0 : i32
    return %arg0, %c0_i32 : i32, i32
  }
}

</mosaic_0001>

<llo_original>
// kernel: tpu_custom_call.1
$region0: #{tpu_custom_call.1}
  #allocation0 [shape = 'u32[]', space=smem, size = 0x4, offset = 0x4, fixed_abs, tag = 'smem constant byte address 0x4 - core index']
  #allocation1 [shape = 'u32[144,128]{1,0:T(1,128)}', space=vmem, size = 0x12000, scoped, tag = 'internal scratch']
  %s0 = inlined_call_operand.hbm [shape: f32[8,16], index: 0, kind: input, shape index: {}]
  %s1 = inlined_call_operand.hbm [shape: f32[8,16], index: 1, kind: input, shape index: {}]
  %s2 = inlined_call_operand.vmem [shape: f32[1,8], index: 2, kind: input, shape index: {}]
  %s3 = inlined_call_operand.vmem [shape: f32[1,8], index: 3, kind: input, shape index: {}]
  %s4 = inlined_call_operand.hbm [shape: f32[8,32], index: 4, kind: input, shape index: {}]
  %s5 = inlined_call_operand.hbm [shape: f32[16,32], index: 5, kind: input, shape index: {}]
  %s6 = inlined_call_operand.hbm [shape: f32[1,32], index: 6, kind: input, shape index: {}]
  %s7 = inlined_call_operand.hbm [shape: f32[1,32], index: 7, kind: input, shape index: {}]
  %s8 = inlined_call_operand.hbm [shape: f32[1,32], index: 8, kind: input, shape index: {}]
  %s9 = inlined_call_operand.vmem [shape: f32[32,32], index: 9, kind: input, shape index: {}]
  %s10 = inlined_call_operand.vmem [shape: f32[1,32], index: 10, kind: input, shape index: {}]
  %s11 = inlined_call_operand.hbm [shape: f32[1,32], index: 11, kind: input, shape index: {}]
  %s12 = inlined_call_operand.hbm [shape: f32[1,32], index: 12, kind: input, shape index: {}]
  %s13 = inlined_call_operand.hbm [shape: f32[32,1280], index: 13, kind: input, shape index: {}]
  %s14 = inlined_call_operand.vmem [shape: f32[1,1280], index: 14, kind: input, shape index: {}]
  %s15 = inlined_call_operand.hbm [shape: f32[8,1280], index: 15, kind: output, shape index: {}]
  %s16 = sld [smem:[#allocation0]]
  $region110: #{tpu_custom_call.1} parent=0
    _
  %s18 = ssub.s32 1, %s16
  %s19 = scalar_select 0, %s18, %s16
  $region1: #{tpu_custom_call.1} parent=0
    #allocation2 [shape = 'u8[4096]{0}', space=vmem, size = 0x1000, scoped, tag = 'input window, operand 0, single buffered']
    #allocation3 [shape = 's32[1]{0}', space=sflag, size = 0x4, scoped, tag = 'scoped memory for tpu_custom_call.1']
    #allocation4 [shape = 's32[1]{0}', space=sflag, size = 0x4, scoped, tag = 'scoped memory for tpu_custom_call.1']
    #allocation5 [shape = 'u8[4096]{0}', space=vmem, size = 0x1000, scoped, tag = 'input window, operand 1, single buffered']
    #allocation6 [shape = 's32[1]{0}', space=sflag, size = 0x4, scoped, tag = 'scoped memory for tpu_custom_call.1']
    #allocation7 [shape = 'u8[4096]{0}', space=vmem, size = 0x1000, scoped, tag = 'input window, operand 4, single buffered']
    #allocation8 [shape = 'u8[8192]{0}', space=vmem, size = 0x2000, scoped, tag = 'input window, operand 5, single buffered']
    #allocation9 [shape = 's32[1]{0}', space=sflag, size = 0x4, scoped, tag = 'scoped memory for tpu_custom_call.1']
    #allocation10 [shape = 'u8[512]{0}', space=vmem, size = 0x400, scoped, tag = 'input window, operand 6, single buffered']
    #allocation11 [shape = 'u8[512]{0}', space=vmem, size = 0x400, scoped, tag = 'input window, operand 7, single buffered']
    #allocation12 [shape = 's32[1]{0}', space=sflag, size = 0x4, scoped, tag = 'scoped memory for tpu_custom_call.1']
    #allocation13 [shape = 'u8[512]{0}', space=vmem, size = 0x400, scoped, tag = 'input window, operand 8, single buffered']
    #allocation14 [shape = 'u8[512]{0}', space=vmem, size = 0x400, scoped, tag = 'input window, operand 11, single buffered']
    #allocation15 [shape = 's32[1]{0}', space=sflag, size = 0x4, scoped, tag = 'scoped memory for tpu_custom_call.1']
    #allocation16 [shape = 'u8[512]{0}', space=vmem, size = 0x400, scoped, tag = 'input window, operand 12, single buffered']
    #allocation17 [shape = 'u8[163840]{0}', space=vmem, size = 0x28000, scoped, tag = 'input window, operand 13, single buffered']
    #allocation18 [shape = 's32[1]{0}', space=sflag, size = 0x4, scoped, tag = 'scoped memory for tpu_custom_call.1']
    #allocation19 [shape = 'u8[40960]{0}', space=vmem, size = 0xa000, scoped, tag = 'output window, operand 0, single buffered']
    %20 = vsyncpa [#allocation3], 0
    %21 = vsyncpa [#allocation6], 0
    %22 = vsyncpa [#allocation9], 0
    %23 = vsyncpa [#allocation12], 0
    %24 = vsyncpa [#allocation15], 0
    %25 = vsyncpa [#allocation18], 0
    %26 = vsyncpa [#allocation4], 0
    // Predicated region
    $region2: #{tpu_custom_call.1} parent=1 // pred_check
      _
    $region3: #{tpu_custom_call.1} parent=1 // pred_check_branch
      %28 = sbr.rel (0) target = $region5
    $region4: #{tpu_custom_call.1} parent=1 // pred_region
      %s30 = ssub.s32 128, 128
      %31 = vsyncadd [#allocation3], %s30
      %s33 = sshll.u32 [#allocation2], 4
      %s34 = int_to_ptr.vmem [resolvable:$true] %s33
      %36 = dma.hbm_to_vmem [thread:$0]  %s0, 128, %s34, [#allocation3]
    $region5: #{tpu_custom_call.1} parent=1 // pred_fallthru
      _
    // Predicated region
    $region6: #{tpu_custom_call.1} parent=1 // pred_check
      _
    $region7: #{tpu_custom_call.1} parent=1 // pred_check_branch
      %38 = sbr.rel (0) target = $region9
    $region8: #{tpu_custom_call.1} parent=1 // pred_region
      %s40 = ssub.s32 128, 128
      %41 = vsyncadd [#allocation6], %s40
      %s43 = sshll.u32 [#allocation5], 4
      %s44 = int_to_ptr.vmem [resolvable:$true] %s43
      %46 = dma.hbm_to_vmem [thread:$0]  %s1, 128, %s44, [#allocation6]
    $region9: #{tpu_custom_call.1} parent=1 // pred_fallthru
      _
    // Predicated region
    $region10: #{tpu_custom_call.1} parent=1 // pred_check
      _
    $region11: #{tpu_custom_call.1} parent=1 // pred_check_branch
      %48 = sbr.rel (0) target = $region13
    $region12: #{tpu_custom_call.1} parent=1 // pred_region
      _
    $region13: #{tpu_custom_call.1} parent=1 // pred_fallthru
      _
    // Predicated region
    $region14: #{tpu_custom_call.1} parent=1 // pred_check
      _
    $region15: #{tpu_custom_call.1} parent=1 // pred_check_branch
      %50 = sbr.rel (0) target = $region17
    $region16: #{tpu_custom_call.1} parent=1 // pred_region
      _
    $region17: #{tpu_custom_call.1} parent=1 // pred_fallthru
      _
    // Predicated region
    $region18: #{tpu_custom_call.1} parent=1 // pred_check
      _
    $region19: #{tpu_custom_call.1} parent=1 // pred_check_branch
      %52 = sbr.rel (0) target = $region21
    $region20: #{tpu_custom_call.1} parent=1 // pred_region
      %s54 = ssub.s32 128, 128
      %55 = vsyncadd [#allocation6], %s54
      %s57 = sshll.u32 [#allocation7], 4
      %s58 = int_to_ptr.vmem [resolvable:$true] %s57
      %60 = dma.hbm_to_vmem [thread:$0]  %s4, 128, %s58, [#allocation6]
    $region21: #{tpu_custom_call.1} parent=1 // pred_fallthru
      _
    // Predicated region
    $region22: #{tpu_custom_call.1} parent=1 // pred_check
      _
    $region23: #{tpu_custom_call.1} parent=1 // pred_check_branch
      %62 = sbr.rel (0) target = $region25
    $region24: #{tpu_custom_call.1} parent=1 // pred_region
      %s64 = ssub.s32 256, 256
      %65 = vsyncadd [#allocation9], %s64
      %s66 = sshll.u32 [#allocation8], 4
      %s67 = int_to_ptr.vmem [resolvable:$true] %s66
      %72 = dma.hbm_to_vmem [thread:$0]  %s5, 256, %s67, [#allocation9], 128, 128, 8
    $region25: #{tpu_custom_call.1} parent=1 // pred_fallthru
      _
    // Predicated region
    $region26: #{tpu_custom_call.1} parent=1 // pred_check
      _
    $region27: #{tpu_custom_call.1} parent=1 // pred_check_branch
      %74 = sbr.rel (0) target = $region29
    $region28: #{tpu_custom_call.1} parent=1 // pred_region
      %s76 = ssub.s32 16, 16
      %77 = vsyncadd [#allocation9], %s76
      %s79 = sshll.u32 [#allocation10], 4
      %s80 = int_to_ptr.vmem [resolvable:$true] %s79
      %82 = dma.hbm_to_vmem [thread:$0]  %s6, 16, %s80, [#allocation9]
    $region29: #{tpu_custom_call.1} parent=1 // pred_fallthru
      _
    // Predicated region
    $region30: #{tpu_custom_call.1} parent=1 // pred_check
      _
    $region31: #{tpu_custom_call.1} parent=1 // pred_check_branch
      %84 = sbr.rel (0) target = $region33
    $region32: #{tpu_custom_call.1} parent=1 // pred_region
      %s86 = ssub.s32 16, 16
      %87 = vsyncadd [#allocation12], %s86
      %s89 = sshll.u32 [#allocation11], 4
      %s90 = int_to_ptr.vmem [resolvable:$true] %s89
      %92 = dma.hbm_to_vmem [thread:$0]  %s7, 16, %s90, [#allocation12]
    $region33: #{tpu_custom_call.1} parent=1 // pred_fallthru
      _
    // Predicated region
    $region34: #{tpu_custom_call.1} parent=1 // pred_check
      _
    $region35: #{tpu_custom_call.1} parent=1 // pred_check_branch
      %94 = sbr.rel (0) target = $region37
    $region36: #{tpu_custom_call.1} parent=1 // pred_region
      %s96 = ssub.s32 16, 16
      %97 = vsyncadd [#allocation12], %s96
      %s99 = sshll.u32 [#allocation13], 4
      %s100 = int_to_ptr.vmem [resolvable:$true] %s99
      %102 = dma.hbm_to_vmem [thread:$0]  %s8, 16, %s100, [#allocation12]
    $region37: #{tpu_custom_call.1} parent=1 // pred_fallthru
      _
    // Predicated region
    $region38: #{tpu_custom_call.1} parent=1 // pred_check
      _
    $region39: #{tpu_custom_call.1} parent=1 // pred_check_branch
      %104 = sbr.rel (0) target = $region41
    $region40: #{tpu_custom_call.1} parent=1 // pred_region
      _
    $region41: #{tpu_custom_call.1} parent=1 // pred_fallthru
      _
    // Predicated region
    $region42: #{tpu_custom_call.1} parent=1 // pred_check
      _
    $region43: #{tpu_custom_call.1} parent=1 // pred_check_branch
      %106 = sbr.rel (0) target = $region45
    $region44: #{tpu_custom_call.1} parent=1 // pred_region
      _
    $region45: #{tpu_custom_call.1} parent=1 // pred_fallthru
      _
    // Predicated region
    $region46: #{tpu_custom_call.1} parent=1 // pred_check
      _
    $region47: #{tpu_custom_call.1} parent=1 // pred_check_branch
      %108 = sbr.rel (0) target = $region49
    $region48: #{tpu_custom_call.1} parent=1 // pred_region
      %s110 = ssub.s32 16, 16
      %111 = vsyncadd [#allocation15], %s110
      %s113 = sshll.u32 [#allocation14], 4
      %s114 = int_to_ptr.vmem [resolvable:$true] %s113
      %116 = dma.hbm_to_vmem [thread:$0]  %s11, 16, %s114, [#allocation15]
    $region49: #{tpu_custom_call.1} parent=1 // pred_fallthru
      _
    // Predicated region
    $region50: #{tpu_custom_call.1} parent=1 // pred_check
      _
    $region51: #{tpu_custom_call.1} parent=1 // pred_check_branch
      %118 = sbr.rel (0) target = $region53
    $region52: #{tpu_custom_call.1} parent=1 // pred_region
      %s120 = ssub.s32 16, 16
      %121 = vsyncadd [#allocation15], %s120
      %s123 = sshll.u32 [#allocation16], 4
      %s124 = int_to_ptr.vmem [resolvable:$true] %s123
      %126 = dma.hbm_to_vmem [thread:$0]  %s12, 16, %s124, [#allocation15]
    $region53: #{tpu_custom_call.1} parent=1 // pred_fallthru
      _
    // Predicated region
    $region54: #{tpu_custom_call.1} parent=1 // pred_check
      _
    $region55: #{tpu_custom_call.1} parent=1 // pred_check_branch
      %128 = sbr.rel (0) target = $region57
    $region56: #{tpu_custom_call.1} parent=1 // pred_region
      %s130 = ssub.s32 5120, 5120
      %131 = vsyncadd [#allocation18], %s130
      %s132 = sshll.u32 [#allocation17], 4
      %s133 = int_to_ptr.vmem [resolvable:$true] %s132
      %138 = dma.hbm_to_vmem [thread:$0]  %s13, 5120, %s133, [#allocation18], 1280, 1280, 80
    $region57: #{tpu_custom_call.1} parent=1 // pred_fallthru
      _
    // Predicated region
    $region58: #{tpu_custom_call.1} parent=1 // pred_check
      _
    $region59: #{tpu_custom_call.1} parent=1 // pred_check_branch
      %140 = sbr.rel (0) target = $region61
    $region60: #{tpu_custom_call.1} parent=1 // pred_region
      _
    $region61: #{tpu_custom_call.1} parent=1 // pred_fallthru
      _
    // Predicated region
    $region62: #{tpu_custom_call.1} parent=1 // pred_check
      _
    $region63: #{tpu_custom_call.1} parent=1 // pred_check_branch
      %142 = sbr.rel (0) target = $region65
    $region64: #{tpu_custom_call.1} parent=1 // pred_region
      %143 = dma.done [#allocation3], 128
    $region65: #{tpu_custom_call.1} parent=1 // pred_fallthru
      _
    // Predicated region
    $region66: #{tpu_custom_call.1} parent=1 // pred_check
      _
    $region67: #{tpu_custom_call.1} parent=1 // pred_check_branch
      %145 = sbr.rel (0) target = $region69
    $region68: #{tpu_custom_call.1} parent=1 // pred_region
      %146 = dma.done [#allocation6], 128
    $region69: #{tpu_custom_call.1} parent=1 // pred_fallthru
      _
    // Predicated region
    $region70: #{tpu_custom_call.1} parent=1 // pred_check
      _
    $region71: #{tpu_custom_call.1} parent=1 // pred_check_branch
      %148 = sbr.rel (0) target = $region73
    $region72: #{tpu_custom_call.1} parent=1 // pred_region
      %149 = dma.done [#allocation6], 128
    $region73: #{tpu_custom_call.1} parent=1 // pred_fallthru
      _
    // Predicated region
    $region74: #{tpu_custom_call.1} parent=1 // pred_check
      _
    $region75: #{tpu_custom_call.1} parent=1 // pred_check_branch
      %151 = sbr.rel (0) target = $region77
    $region76: #{tpu_custom_call.1} parent=1 // pred_region
      %152 = dma.done [#allocation9], 256
    $region77: #{tpu_custom_call.1} parent=1 // pred_fallthru
      _
    // Predicated region
    $region78: #{tpu_custom_call.1} parent=1 // pred_check
      _
    $region79: #{tpu_custom_call.1} parent=1 // pred_check_branch
      %154 = sbr.rel (0) target = $region81
    $region80: #{tpu_custom_call.1} parent=1 // pred_region
      %155 = dma.done [#allocation9], 16
    $region81: #{tpu_custom_call.1} parent=1 // pred_fallthru
      _
    // Predicated region
    $region82: #{tpu_custom_call.1} parent=1 // pred_check
      _
    $region83: #{tpu_custom_call.1} parent=1 // pred_check_branch
      %157 = sbr.rel (0) target = $region85
    $region84: #{tpu_custom_call.1} parent=1 // pred_region
      %158 = dma.done [#allocation12], 16
    $region85: #{tpu_custom_call.1} parent=1 // pred_fallthru
      _
    // Predicated region
    $region86: #{tpu_custom_call.1} parent=1 // pred_check
      _
    $region87: #{tpu_custom_call.1} parent=1 // pred_check_branch
      %160 = sbr.rel (0) target = $region89
    $region88: #{tpu_custom_call.1} parent=1 // pred_region
      %161 = dma.done [#allocation12], 16
    $region89: #{tpu_custom_call.1} parent=1 // pred_fallthru
      _
    // Predicated region
    $region90: #{tpu_custom_call.1} parent=1 // pred_check
      _
    $region91: #{tpu_custom_call.1} parent=1 // pred_check_branch
      %163 = sbr.rel (0) target = $region93
    $region92: #{tpu_custom_call.1} parent=1 // pred_region
      %164 = dma.done [#allocation15], 16
    $region93: #{tpu_custom_call.1} parent=1 // pred_fallthru
      _
    // Predicated region
    $region94: #{tpu_custom_call.1} parent=1 // pred_check
      _
    $region95: #{tpu_custom_call.1} parent=1 // pred_check_branch
      %166 = sbr.rel (0) target = $region97
    $region96: #{tpu_custom_call.1} parent=1 // pred_region
      %167 = dma.done [#allocation15], 16
    $region97: #{tpu_custom_call.1} parent=1 // pred_fallthru
      _
    // Predicated region
    $region98: #{tpu_custom_call.1} parent=1 // pred_check
      _
    $region99: #{tpu_custom_call.1} parent=1 // pred_check_branch
      %169 = sbr.rel (0) target = $region101
    $region100: #{tpu_custom_call.1} parent=1 // pred_region
      %170 = dma.done [#allocation18], 5120
    $region101: #{tpu_custom_call.1} parent=1 // pred_fallthru
      _
    %v171 = vld [vmem:[#allocation2] sm:$0xff]
    %v172 = vld [vmem:[#allocation5] sm:$0xff]
    %vm173 = vcmask 130048
    %v174 = vsel %vm173, %v171, 0.0
    %175 = vadd.xlane.f32.xlu0 %v174
    %v176 = vpop.xlane.xlu0 %175
    %v177 = vrcp.pop 16.0
    %v178 = vmul.f32 %v176, %v177
    %v179 = vld [vmem:[%s2] sm:$0x1]
    %v181 = vlaneseq
    %v182 = vshrl.u32 %v181, 7
    %v183 = vsub.s32 0, %v182
    %v184 = vrot.slane %v179, %v183
    %v186 = vmul.f32 %v178, %v184
    %v187 = vld [vmem:[%s3] sm:$0x1]
    %v189 = vlaneseq
    %v190 = vshrl.u32 %v189, 7
    %v191 = vsub.s32 0, %v190
    %v192 = vrot.slane %v187, %v191
    %v194 = vadd.f32 %v186, %v192
    %vm195 = vcmp.gt.f32.partialorder %v194, 0.0
    %v196 = vmin.f32 %v194, 0.0
    %v197 = vmul.f32 %v196, 1.442695
    %v198 = vpow.pop %v197
    %v199 = vsub.f32 %v198, 1.0
    %v200 = vmul.f32 %v199, 1.6732632
    %v201 = vsel %vm195, %v194, %v200
    %v202 = vmul.f32 %v201, 1.050701
    %v203 = vld [vmem:[#allocation7] sm:$0xff]
    %v204 = vld [vmem:[#allocation8] sm:$0xff]
    %v205 = vld [vmem:[#allocation8 + $0x8] sm:$0xff]
    %v207 = vsel %vm173, %v172, 0
    %209 = vmatprep.subr.mxu0 0.0
    %210 = vmatpush1.msra.mxu0 %v204
    %211 = vmatprep.subr.mxu0 0.0
    %212 = vmatpush1.msra.mxu0 %v205
    %213 = vmatprep.subr.mxu0 0.0
    %214 = vmatpush1.msra.mxu0 0.0
    %215 = vmatprep.subr.mxu0 0.0
    %216 = vmatpush1.msra.mxu0 0.0
    %217 = vmatprep.subr.mxu0 0.0
    %218 = vmatpush1.msra.mxu0 0.0
    %219 = vmatprep.subr.mxu0 0.0
    %220 = vmatpush1.msra.mxu0 0.0
    %221 = vmatprep.subr.mxu0 0.0
    %222 = vmatpush1.msra.mxu0 0.0
    %223 = vmatprep.subr.mxu0 0.0
    %224 = vmatpush1.msra.mxu0 0.0
    %225 = vmatprep.subr.mxu0 0.0
    %226 = vmatpush1.msra.mxu0 0.0
    %227 = vmatprep.subr.mxu0 0.0
    %228 = vmatpush1.msra.mxu0 0.0
    %229 = vmatprep.subr.mxu0 0.0
    %230 = vmatpush1.msra.mxu0 0.0
    %231 = vmatprep.subr.mxu0 0.0
    %232 = vmatpush1.msra.mxu0 0.0
    %233 = vmatprep.subr.mxu0 0.0
    %234 = vmatpush1.msra.mxu0 0.0
    %235 = vmatprep.subr.mxu0 0.0
    %236 = vmatpush1.msra.mxu0 0.0
    %237 = vmatprep.subr.mxu0 0.0
    %238 = vmatpush1.msra.mxu0 0.0
    %239 = vmatprep.subr.mxu0 0.0
    %240 = vmatpush1.msra.mxu0 0.0
    %241 = vmatprep.subr.mxu0 0.0
    %242 = vmatpush1.msra.mxu0 0.0
    %243 = vmatprep.subr.mxu0 0.0
    %244 = vmatpush1.msra.mxu0 0.0
    %245 = vmatprep.subr.mxu0 0.0
    %246 = vmatpush1.msra.mxu0 0.0
    %247 = vmatprep.subr.mxu0 0.0
    %248 = vmatpush1.msra.mxu0 0.0
    %249 = vmatprep.subr.mxu0 0.0
    %250 = vmatpush1.msra.mxu0 0.0
    %251 = vmatprep.subr.mxu0 0.0
    %252 = vmatpush1.msra.mxu0 0.0
    %253 = vmatprep.subr.mxu0 0.0
    %254 = vmatpush1.msra.mxu0 0.0
    %255 = vmatprep.subr.mxu0 0.0
    %256 = vmatpush1.msra.mxu0 0.0
    %257 = vmatprep.subr.mxu0 0.0
    %258 = vmatpush1.msra.mxu0 0.0
    %259 = vmatprep.subr.mxu0 0.0
    %260 = vmatpush1.msra.mxu0 0.0
    %261 = vmatprep.subr.mxu0 0.0
    %262 = vmatpush1.msra.mxu0 0.0
    %263 = vmatprep.subr.mxu0 0.0
    %264 = vmatpush1.msra.mxu0 0.0
    %265 = vmatprep.subr.mxu0 0.0
    %266 = vmatpush1.msra.mxu0 0.0
    %267 = vmatprep.subr.mxu0 0.0
    %268 = vmatpush1.msra.mxu0 0.0
    %269 = vmatprep.subr.mxu0 0.0
    %270 = vmatpush1.msra.mxu0 0.0
    %271 = vmatprep.subr.mxu0 0.0
    %272 = vmatpush1.msra.mxu0 0.0
    %273 = vmatprep.mubr.f32.mxu0 0.0
    %274 = vmatmul.mubr.f32.gmra.mrb[0].mxu0 %v207
    %v275 = vpop.f32.mrb[0].mxu0
    %v276 = vadd.f32 0.0, %v275
    %v277 = vpop.f32.mrb[0].mxu0
    %278 = vdwg.mxu0
    %vm279 = vcmask 64512
    %v281 = vsel %vm279, %v202, 0
    %283 = vmatprep.subr.mxu0 0.0
    %284 = vmatpush1.msra.mxu0 %v203
    %285 = vmatprep.subr.mxu0 0.0
    %286 = vmatpush1.msra.mxu0 0.0
    %287 = vmatprep.subr.mxu0 0.0
    %288 = vmatpush1.msra.mxu0 0.0
    %289 = vmatprep.subr.mxu0 0.0
    %290 = vmatpush1.msra.mxu0 0.0
    %291 = vmatprep.subr.mxu0 0.0
    %292 = vmatpush1.msra.mxu0 0.0
    %293 = vmatprep.subr.mxu0 0.0
    %294 = vmatpush1.msra.mxu0 0.0
    %295 = vmatprep.subr.mxu0 0.0
    %296 = vmatpush1.msra.mxu0 0.0
    %297 = vmatprep.subr.mxu0 0.0
    %298 = vmatpush1.msra.mxu0 0.0
    %299 = vmatprep.subr.mxu0 0.0
    %300 = vmatpush1.msra.mxu0 0.0
    %301 = vmatprep.subr.mxu0 0.0
    %302 = vmatpush1.msra.mxu0 0.0
    %303 = vmatprep.subr.mxu0 0.0
    %304 = vmatpush1.msra.mxu0 0.0
    %305 = vmatprep.subr.mxu0 0.0
    %306 = vmatpush1.msra.mxu0 0.0
    %307 = vmatprep.subr.mxu0 0.0
    %308 = vmatpush1.msra.mxu0 0.0
    %309 = vmatprep.subr.mxu0 0.0
    %310 = vmatpush1.msra.mxu0 0.0
    %311 = vmatprep.subr.mxu0 0.0
    %312 = vmatpush1.msra.mxu0 0.0
    %313 = vmatprep.subr.mxu0 0.0
    %314 = vmatpush1.msra.mxu0 0.0
    %315 = vmatprep.subr.mxu0 0.0
    %316 = vmatpush1.msra.mxu0 0.0
    %317 = vmatprep.subr.mxu0 0.0
    %318 = vmatpush1.msra.mxu0 0.0
    %319 = vmatprep.subr.mxu0 0.0
    %320 = vmatpush1.msra.mxu0 0.0
    %321 = vmatprep.subr.mxu0 0.0
    %322 = vmatpush1.msra.mxu0 0.0
    %323 = vmatprep.subr.mxu0 0.0
    %324 = vmatpush1.msra.mxu0 0.0
    %325 = vmatprep.subr.mxu0 0.0
    %326 = vmatpush1.msra.mxu0 0.0
    %327 = vmatprep.subr.mxu0 0.0
    %328 = vmatpush1.msra.mxu0 0.0
    %329 = vmatprep.subr.mxu0 0.0
    %330 = vmatpush1.msra.mxu0 0.0
    %331 = vmatprep.subr.mxu0 0.0
    %332 = vmatpush1.msra.mxu0 0.0
    %333 = vmatprep.subr.mxu0 0.0
    %334 = vmatpush1.msra.mxu0 0.0
    %335 = vmatprep.subr.mxu0 0.0
    %336 = vmatpush1.msra.mxu0 0.0
    %337 = vmatprep.subr.mxu0 0.0
    %338 = vmatpush1.msra.mxu0 0.0
    %339 = vmatprep.subr.mxu0 0.0
    %340 = vmatpush1.msra.mxu0 0.0
    %341 = vmatprep.subr.mxu0 0.0
    %342 = vmatpush1.msra.mxu0 0.0
    %343 = vmatprep.subr.mxu0 0.0
    %344 = vmatpush1.msra.mxu0 0.0
    %345 = vmatprep.subr.mxu0 0.0
    %346 = vmatpush1.msra.mxu0 0.0
    %347 = vmatprep.mubr.f32.mxu0 0.0
    %348 = vmatmul.mubr.f32.gmra.mrb[0].mxu0 %v281
    %v349 = vpop.f32.mrb[0].mxu0
    %v350 = vadd.f32 %v276, %v349
    %v351 = vpop.f32.mrb[0].mxu0
    %352 = vdwg.mxu0
    %v353 = vld [vmem:[#allocation10] sm:$0x1]
    %v355 = vlaneseq
    %v356 = vshrl.u32 %v355, 7
    %v357 = vsub.s32 0, %v356
    %v358 = vrot.slane %v353, %v357
    %v360 = vadd.f32 %v350, %v358
    %vm361 = vcmp.gt.f32.partialorder %v360, 0.0
    %v362 = vmin.f32 %v360, 0.0
    %v363 = vmul.f32 %v362, 1.442695
    %v364 = vpow.pop %v363
    %v365 = vsub.f32 %v364, 1.0
    %v366 = vmul.f32 %v365, 1.6732632
    %v367 = vsel %vm361, %v360, %v366
    %v368 = vmul.f32 %v367, 1.050701
    %v369 = vld [vmem:[#allocation11] sm:$0x1]
    %v370 = vld [vmem:[#allocation13] sm:$0x1]
    %vm371 = vcmask 261120
    %v372 = vsel %vm371, %v368, 0.0
    %373 = vadd.xlane.f32.xlu0 %v372
    %v374 = vpop.xlane.xlu0 %373
    %v375 = vrcp.pop 32.0
    %v376 = vmul.f32 %v374, %v375
    %v377 = vsub.f32 %v368, %v376
    %v378 = vmul.f32 %v377, %v377
    %v379 = vsel %vm371, %v378, 0.0
    %380 = vadd.xlane.f32.xlu0 %v379
    %v381 = vpop.xlane.xlu0 %380
    %v382 = vmul.f32 %v381, %v375
    %v383 = vadd.f32 %v382, 1e-05
    %v384 = vrsqrt.pop %v383
    %v385 = vmul.f32 %v377, %v384
    %v387 = vlaneseq
    %v388 = vshrl.u32 %v387, 7
    %v389 = vsub.s32 0, %v388
    %v390 = vrot.slane %v369, %v389
    %v392 = vmul.f32 %v385, %v390
    %v394 = vlaneseq
    %v395 = vshrl.u32 %v394, 7
    %v396 = vsub.s32 0, %v395
    %v397 = vrot.slane %v370, %v396
    %v399 = vadd.f32 %v392, %v397
    %v400 = vld [vmem:[%s9] sm:$0xff]
    %v401 = vld [vmem:[%s9 + $0x8] sm:$0xff]
    %v402 = vld [vmem:[%s9 + $0x10] sm:$0xff]
    %v403 = vld [vmem:[%s9 + $0x18] sm:$0xff]
    %v404 = vld [vmem:[%s10] sm:$0x1]
    %v406 = vlaneseq
    %v407 = vshrl.u32 %v406, 7
    %v408 = vsub.s32 0, %v407
    %v409 = vrot.slane %v404, %v408
    %v412 = vsel %vm371, %v399, 0
    %414 = vmatprep.subr.mxu0 0.0
    %415 = vmatpush1.msra.mxu0 %v400
    %416 = vmatprep.subr.mxu0 0.0
    %417 = vmatpush1.msra.mxu0 %v401
    %418 = vmatprep.subr.mxu0 0.0
    %419 = vmatpush1.msra.mxu0 %v402
    %420 = vmatprep.subr.mxu0 0.0
    %421 = vmatpush1.msra.mxu0 %v403
    %422 = vmatprep.subr.mxu0 0.0
    %423 = vmatpush1.msra.mxu0 0.0
    %424 = vmatprep.subr.mxu0 0.0
    %425 = vmatpush1.msra.mxu0 0.0
    %426 = vmatprep.subr.mxu0 0.0
    %427 = vmatpush1.msra.mxu0 0.0
    %428 = vmatprep.subr.mxu0 0.0
    %429 = vmatpush1.msra.mxu0 0.0
    %430 = vmatprep.subr.mxu0 0.0
    %431 = vmatpush1.msra.mxu0 0.0
    %432 = vmatprep.subr.mxu0 0.0
    %433 = vmatpush1.msra.mxu0 0.0
    %434 = vmatprep.subr.mxu0 0.0
    %435 = vmatpush1.msra.mxu0 0.0
    %436 = vmatprep.subr.mxu0 0.0
    %437 = vmatpush1.msra.mxu0 0.0
    %438 = vmatprep.subr.mxu0 0.0
    %439 = vmatpush1.msra.mxu0 0.0
    %440 = vmatprep.subr.mxu0 0.0
    %441 = vmatpush1.msra.mxu0 0.0
    %442 = vmatprep.subr.mxu0 0.0
    %443 = vmatpush1.msra.mxu0 0.0
    %444 = vmatprep.subr.mxu0 0.0
    %445 = vmatpush1.msra.mxu0 0.0
    %446 = vmatprep.subr.mxu0 0.0
    %447 = vmatpush1.msra.mxu0 0.0
    %448 = vmatprep.subr.mxu0 0.0
    %449 = vmatpush1.msra.mxu0 0.0
    %450 = vmatprep.subr.mxu0 0.0
    %451 = vmatpush1.msra.mxu0 0.0
    %452 = vmatprep.subr.mxu0 0.0
    %453 = vmatpush1.msra.mxu0 0.0
    %454 = vmatprep.subr.mxu0 0.0
    %455 = vmatpush1.msra.mxu0 0.0
    %456 = vmatprep.subr.mxu0 0.0
    %457 = vmatpush1.msra.mxu0 0.0
    %458 = vmatprep.subr.mxu0 0.0
    %459 = vmatpush1.msra.mxu0 0.0
    %460 = vmatprep.subr.mxu0 0.0
    %461 = vmatpush1.msra.mxu0 0.0
    %462 = vmatprep.subr.mxu0 0.0
    %463 = vmatpush1.msra.mxu0 0.0
    %464 = vmatprep.subr.mxu0 0.0
    %465 = vmatpush1.msra.mxu0 0.0
    %466 = vmatprep.subr.mxu0 0.0
    %467 = vmatpush1.msra.mxu0 0.0
    %468 = vmatprep.subr.mxu0 0.0
    %469 = vmatpush1.msra.mxu0 0.0
    %470 = vmatprep.subr.mxu0 0.0
    %471 = vmatpush1.msra.mxu0 0.0
    %472 = vmatprep.subr.mxu0 0.0
    %473 = vmatpush1.msra.mxu0 0.0
    %474 = vmatprep.subr.mxu0 0.0
    %475 = vmatpush1.msra.mxu0 0.0
    %476 = vmatprep.subr.mxu0 0.0
    %477 = vmatpush1.msra.mxu0 0.0
    %478 = vmatprep.mubr.f32.mxu0 0.0
    %479 = vmatmul.mubr.f32.gmra.mrb[0].mxu0 %v412
    %v480 = vpop.f32.mrb[0].mxu0
    %v481 = vadd.f32 %v409, %v480
    %v482 = vpop.f32.mrb[0].mxu0
    %483 = vdwg.mxu0
    %vm484 = vcmp.gt.f32.partialorder %v481, 0.0
    %v485 = vmin.f32 %v481, 0.0
    %v486 = vmul.f32 %v485, 1.442695
    %v487 = vpow.pop %v486
    %v488 = vsub.f32 %v487, 1.0
    %v489 = vmul.f32 %v488, 1.6732632
    %v490 = vsel %vm484, %v481, %v489
    %v491 = vmul.f32 %v490, 1.050701
    %v492 = vld [vmem:[#allocation14] sm:$0x1]
    %v493 = vld [vmem:[#allocation16] sm:$0x1]
    %v494 = vsel %vm371, %v491, 0.0
    %495 = vadd.xlane.f32.xlu0 %v494
    %v496 = vpop.xlane.xlu0 %495
    %v497 = vmul.f32 %v496, %v375
    %v498 = vsub.f32 %v491, %v497
    %v499 = vmul.f32 %v498, %v498
    %v500 = vsel %vm371, %v499, 0.0
    %501 = vadd.xlane.f32.xlu0 %v500
    %v502 = vpop.xlane.xlu0 %501
    %v503 = vmul.f32 %v502, %v375
    %v504 = vadd.f32 %v503, 1e-05
    %v505 = vrsqrt.pop %v504
    %v506 = vmul.f32 %v498, %v505
    %v508 = vlaneseq
    %v509 = vshrl.u32 %v508, 7
    %v510 = vsub.s32 0, %v509
    %v511 = vrot.slane %v492, %v510
    %v513 = vmul.f32 %v506, %v511
    %v515 = vlaneseq
    %v516 = vshrl.u32 %v515, 7
    %v517 = vsub.s32 0, %v516
    %v518 = vrot.slane %v493, %v517
    %v520 = vadd.f32 %v513, %v518
    %v521 = vld [vmem:[#allocation17] sm:$0xff]
    %v522 = vld [vmem:[#allocation17 + $0x8] sm:$0xff]
    %v523 = vld [vmem:[#allocation17 + $0x10] sm:$0xff]
    %v524 = vld [vmem:[#allocation17 + $0x18] sm:$0xff]
    %v525 = vld [vmem:[#allocation17 + $0x20] sm:$0xff]
    %v526 = vld [vmem:[#allocation17 + $0x28] sm:$0xff]
    %v527 = vld [vmem:[#allocation17 + $0x30] sm:$0xff]
    %v528 = vld [vmem:[#allocation17 + $0x38] sm:$0xff]
    %v529 = vld [vmem:[#allocation17 + $0x40] sm:$0xff]
    %v530 = vld [vmem:[#allocation17 + $0x48] sm:$0xff]
    %v531 = vld [vmem:[#allocation17 + $0x50] sm:$0xff]
    %v532 = vld [vmem:[#allocation17 + $0x58] sm:$0xff]
    %v533 = vld [vmem:[#allocation17 + $0x60] sm:$0xff]
    %v534 = vld [vmem:[#allocation17 + $0x68] sm:$0xff]
    %v535 = vld [vmem:[#allocation17 + $0x70] sm:$0xff]
    %v536 = vld [vmem:[#allocation17 + $0x78] sm:$0xff]
    %v537 = vld [vmem:[#allocation17 + $0x80] sm:$0xff]
    %v538 = vld [vmem:[#allocation17 + $0x88] sm:$0xff]
    %v539 = vld [vmem:[#allocation17 + $0x90] sm:$0xff]
    %v540 = vld [vmem:[#allocation17 + $0x98] sm:$0xff]
    %v541 = vld [vmem:[#allocation17 + $0xa0] sm:$0xff]
    %v542 = vld [vmem:[#allocation17 + $0xa8] sm:$0xff]
    %v543 = vld [vmem:[#allocation17 + $0xb0] sm:$0xff]
    %v544 = vld [vmem:[#allocation17 + $0xb8] sm:$0xff]
    %v545 = vld [vmem:[#allocation17 + $0xc0] sm:$0xff]
    %v546 = vld [vmem:[#allocation17 + $0xc8] sm:$0xff]
    %v547 = vld [vmem:[#allocation17 + $0xd0] sm:$0xff]
    %v548 = vld [vmem:[#allocation17 + $0xd8] sm:$0xff]
    %v549 = vld [vmem:[#allocation17 + $0xe0] sm:$0xff]
    %v550 = vld [vmem:[#allocation17 + $0xe8] sm:$0xff]
    %v551 = vld [vmem:[#allocation17 + $0xf0] sm:$0xff]
    %v552 = vld [vmem:[#allocation17 + $0xf8] sm:$0xff]
    %v553 = vld [vmem:[#allocation17 + $0x100] sm:$0xff]
    %v554 = vld [vmem:[#allocation17 + $0x108] sm:$0xff]
    %v555 = vld [vmem:[#allocation17 + $0x110] sm:$0xff]
    %v556 = vld [vmem:[#allocation17 + $0x118] sm:$0xff]
    %v557 = vld [vmem:[#allocation17 + $0x120] sm:$0xff]
    %v558 = vld [vmem:[#allocation17 + $0x128] sm:$0xff]
    %v559 = vld [vmem:[#allocation17 + $0x130] sm:$0xff]
    %v560 = vld [vmem:[#allocation17 + $0x138] sm:$0xff]
    %v561 = vld [vmem:[%s14] sm:$0xff]
    %v562 = vld [vmem:[%s14 + $0x8] sm:$0x3]
    %v565 = vlaneseq
    %v566 = vshrl.u32 %v565, 7
    %v567 = vsub.s32 0, %v566
    %v568 = vrot.slane %v561, %v567
    %v569 = vlaneseq
    %v570 = vshrl.u32 %v569, 7
    %v571 = vsub.s32 1, %v570
    %v572 = vrot.slane %v561, %v571
    %v573 = vlaneseq
    %v574 = vshrl.u32 %v573, 7
    %v575 = vsub.s32 2, %v574
    %v576 = vrot.slane %v561, %v575
    %v577 = vlaneseq
    %v578 = vshrl.u32 %v577, 7
    %v579 = vsub.s32 3, %v578
    %v580 = vrot.slane %v561, %v579
    %v581 = vlaneseq
    %v582 = vshrl.u32 %v581, 7
    %v583 = vsub.s32 4, %v582
    %v584 = vrot.slane %v561, %v583
    %v585 = vlaneseq
    %v586 = vshrl.u32 %v585, 7
    %v587 = vsub.s32 5, %v586
    %v588 = vrot.slane %v561, %v587
    %v589 = vlaneseq
    %v590 = vshrl.u32 %v589, 7
    %v591 = vsub.s32 6, %v590
    %v592 = vrot.slane %v561, %v591
    %v593 = vlaneseq
    %v594 = vshrl.u32 %v593, 7
    %v595 = vsub.s32 7, %v594
    %v596 = vrot.slane %v561, %v595
    %v597 = vlaneseq
    %v598 = vshrl.u32 %v597, 7
    %v599 = vsub.s32 0, %v598
    %v600 = vrot.slane %v562, %v599
    %v601 = vlaneseq
    %v602 = vshrl.u32 %v601, 7
    %v603 = vsub.s32 1, %v602
    %v604 = vrot.slane %v562, %v603
    %v616 = vsel %vm371, %v520, 0
    %618 = vmatprep.subr.mxu0 %v522
    %619 = vmatpush1.msra.mxu0 %v521
    %620 = vmatprep.subr.mxu0 %v532
    %621 = vmatpush1.msra.mxu0 %v531
    %622 = vmatprep.subr.mxu0 %v542
    %623 = vmatpush1.msra.mxu0 %v541
    %624 = vmatprep.subr.mxu0 %v552
    %625 = vmatpush1.msra.mxu0 %v551
    %626 = vmatprep.subr.mxu0 0.0
    %627 = vmatpush1.msra.mxu0 0.0
    %628 = vmatprep.subr.mxu0 0.0
    %629 = vmatpush1.msra.mxu0 0.0
    %630 = vmatprep.subr.mxu0 0.0
    %631 = vmatpush1.msra.mxu0 0.0
    %632 = vmatprep.subr.mxu0 0.0
    %633 = vmatpush1.msra.mxu0 0.0
    %634 = vmatprep.subr.mxu0 0.0
    %635 = vmatpush1.msra.mxu0 0.0
    %636 = vmatprep.subr.mxu0 0.0
    %637 = vmatpush1.msra.mxu0 0.0
    %638 = vmatprep.subr.mxu0 0.0
    %639 = vmatpush1.msra.mxu0 0.0
    %640 = vmatprep.subr.mxu0 0.0
    %641 = vmatpush1.msra.mxu0 0.0
    %642 = vmatprep.subr.mxu0 0.0
    %643 = vmatpush1.msra.mxu0 0.0
    %644 = vmatprep.subr.mxu0 0.0
    %645 = vmatpush1.msra.mxu0 0.0
    %646 = vmatprep.subr.mxu0 0.0
    %647 = vmatpush1.msra.mxu0 0.0
    %648 = vmatprep.subr.mxu0 0.0
    %649 = vmatpush1.msra.mxu0 0.0
    %650 = vmatprep.subr.mxu0 0.0
    %651 = vmatpush1.msra.mxu0 0.0
    %652 = vmatprep.subr.mxu0 0.0
    %653 = vmatpush1.msra.mxu0 0.0
    %654 = vmatprep.subr.mxu0 0.0
    %655 = vmatpush1.msra.mxu0 0.0
    %656 = vmatprep.subr.mxu0 0.0
    %657 = vmatpush1.msra.mxu0 0.0
    %658 = vmatprep.subr.mxu0 0.0
    %659 = vmatpush1.msra.mxu0 0.0
    %660 = vmatprep.subr.mxu0 0.0
    %661 = vmatpush1.msra.mxu0 0.0
    %662 = vmatprep.subr.mxu0 0.0
    %663 = vmatpush1.msra.mxu0 0.0
    %664 = vmatprep.subr.mxu0 0.0
    %665 = vmatpush1.msra.mxu0 0.0
    %666 = vmatprep.subr.mxu0 0.0
    %667 = vmatpush1.msra.mxu0 0.0
    %668 = vmatprep.subr.mxu0 0.0
    %669 = vmatpush1.msra.mxu0 0.0
    %670 = vmatprep.subr.mxu0 0.0
    %671 = vmatpush1.msra.mxu0 0.0
    %672 = vmatprep.subr.mxu0 0.0
    %673 = vmatpush1.msra.mxu0 0.0
    %674 = vmatprep.subr.mxu0 0.0
    %675 = vmatpush1.msra.mxu0 0.0
    %676 = vmatprep.subr.mxu0 0.0
    %677 = vmatpush1.msra.mxu0 0.0
    %678 = vmatprep.subr.mxu0 0.0
    %679 = vmatpush1.msra.mxu0 0.0
    %680 = vmatprep.subr.mxu0 0.0
    %681 = vmatpush1.msra.mxu0 0.0
    %682 = vmatprep.mubr.f32.mxu0 0.0
    %683 = vmatmul.mubr.f32.gmra.mrb[0].mxu0 %v616
    %v684 = vpop.f32.mrb[0].mxu0
    %v685 = vadd.f32 %v568, %v684
    %v686 = vpop.f32.mrb[0].mxu0
    %v687 = vadd.f32 %v572, %v686
    %688 = vdwg.mxu0
    %689 = vmatprep.subr.mxu0 %v524
    %690 = vmatpush1.msra.mxu0 %v523
    %691 = vmatprep.subr.mxu0 %v534
    %692 = vmatpush1.msra.mxu0 %v533
    %693 = vmatprep.subr.mxu0 %v544
    %694 = vmatpush1.msra.mxu0 %v543
    %695 = vmatprep.subr.mxu0 %v554
    %696 = vmatpush1.msra.mxu0 %v553
    %697 = vmatprep.subr.mxu0 0.0
    %698 = vmatpush1.msra.mxu0 0.0
    %699 = vmatprep.subr.mxu0 0.0
    %700 = vmatpush1.msra.mxu0 0.0
    %701 = vmatprep.subr.mxu0 0.0
    %702 = vmatpush1.msra.mxu0 0.0
    %703 = vmatprep.subr.mxu0 0.0
    %704 = vmatpush1.msra.mxu0 0.0
    %705 = vmatprep.subr.mxu0 0.0
    %706 = vmatpush1.msra.mxu0 0.0
    %707 = vmatprep.subr.mxu0 0.0
    %708 = vmatpush1.msra.mxu0 0.0
    %709 = vmatprep.subr.mxu0 0.0
    %710 = vmatpush1.msra.mxu0 0.0
    %711 = vmatprep.subr.mxu0 0.0
    %712 = vmatpush1.msra.mxu0 0.0
    %713 = vmatprep.subr.mxu0 0.0
    %714 = vmatpush1.msra.mxu0 0.0
    %715 = vmatprep.subr.mxu0 0.0
    %716 = vmatpush1.msra.mxu0 0.0
    %717 = vmatprep.subr.mxu0 0.0
    %718 = vmatpush1.msra.mxu0 0.0
    %719 = vmatprep.subr.mxu0 0.0
    %720 = vmatpush1.msra.mxu0 0.0
    %721 = vmatprep.subr.mxu0 0.0
    %722 = vmatpush1.msra.mxu0 0.0
    %723 = vmatprep.subr.mxu0 0.0
    %724 = vmatpush1.msra.mxu0 0.0
    %725 = vmatprep.subr.mxu0 0.0
    %726 = vmatpush1.msra.mxu0 0.0
    %727 = vmatprep.subr.mxu0 0.0
    %728 = vmatpush1.msra.mxu0 0.0
    %729 = vmatprep.subr.mxu0 0.0
    %730 = vmatpush1.msra.mxu0 0.0
    %731 = vmatprep.subr.mxu0 0.0
    %732 = vmatpush1.msra.mxu0 0.0
    %733 = vmatprep.subr.mxu0 0.0
    %734 = vmatpush1.msra.mxu0 0.0
    %735 = vmatprep.subr.mxu0 0.0
    %736 = vmatpush1.msra.mxu0 0.0
    %737 = vmatprep.subr.mxu0 0.0
    %738 = vmatpush1.msra.mxu0 0.0
    %739 = vmatprep.subr.mxu0 0.0
    %740 = vmatpush1.msra.mxu0 0.0
    %741 = vmatprep.subr.mxu0 0.0
    %742 = vmatpush1.msra.mxu0 0.0
    %743 = vmatprep.subr.mxu0 0.0
    %744 = vmatpush1.msra.mxu0 0.0
    %745 = vmatprep.subr.mxu0 0.0
    %746 = vmatpush1.msra.mxu0 0.0
    %747 = vmatprep.subr.mxu0 0.0
    %748 = vmatpush1.msra.mxu0 0.0
    %749 = vmatprep.subr.mxu0 0.0
    %750 = vmatpush1.msra.mxu0 0.0
    %751 = vmatprep.subr.mxu0 0.0
    %752 = vmatpush1.msra.mxu0 0.0
    %753 = vmatprep.mubr.f32.mxu0 0.0
    %754 = vmatmul.mubr.f32.gmra.mrb[0].mxu0 %v616
    %v755 = vpop.f32.mrb[0].mxu0
    %v756 = vadd.f32 %v576, %v755
    %v757 = vpop.f32.mrb[0].mxu0
    %v758 = vadd.f32 %v580, %v757
    %759 = vdwg.mxu0
    %760 = vmatprep.subr.mxu0 %v526
    %761 = vmatpush1.msra.mxu0 %v525
    %762 = vmatprep.subr.mxu0 %v536
    %763 = vmatpush1.msra.mxu0 %v535
    %764 = vmatprep.subr.mxu0 %v546
    %765 = vmatpush1.msra.mxu0 %v545
    %766 = vmatprep.subr.mxu0 %v556
    %767 = vmatpush1.msra.mxu0 %v555
    %768 = vmatprep.subr.mxu0 0.0
    %769 = vmatpush1.msra.mxu0 0.0
    %770 = vmatprep.subr.mxu0 0.0
    %771 = vmatpush1.msra.mxu0 0.0
    %772 = vmatprep.subr.mxu0 0.0
    %773 = vmatpush1.msra.mxu0 0.0
    %774 = vmatprep.subr.mxu0 0.0
    %775 = vmatpush1.msra.mxu0 0.0
    %776 = vmatprep.subr.mxu0 0.0
    %777 = vmatpush1.msra.mxu0 0.0
    %778 = vmatprep.subr.mxu0 0.0
    %779 = vmatpush1.msra.mxu0 0.0
    %780 = vmatprep.subr.mxu0 0.0
    %781 = vmatpush1.msra.mxu0 0.0
    %782 = vmatprep.subr.mxu0 0.0
    %783 = vmatpush1.msra.mxu0 0.0
    %784 = vmatprep.subr.mxu0 0.0
    %785 = vmatpush1.msra.mxu0 0.0
    %786 = vmatprep.subr.mxu0 0.0
    %787 = vmatpush1.msra.mxu0 0.0
    %788 = vmatprep.subr.mxu0 0.0
    %789 = vmatpush1.msra.mxu0 0.0
    %790 = vmatprep.subr.mxu0 0.0
    %791 = vmatpush1.msra.mxu0 0.0
    %792 = vmatprep.subr.mxu0 0.0
    %793 = vmatpush1.msra.mxu0 0.0
    %794 = vmatprep.subr.mxu0 0.0
    %795 = vmatpush1.msra.mxu0 0.0
    %796 = vmatprep.subr.mxu0 0.0
    %797 = vmatpush1.msra.mxu0 0.0
    %798 = vmatprep.subr.mxu0 0.0
    %799 = vmatpush1.msra.mxu0 0.0
    %800 = vmatprep.subr.mxu0 0.0
    %801 = vmatpush1.msra.mxu0 0.0
    %802 = vmatprep.subr.mxu0 0.0
    %803 = vmatpush1.msra.mxu0 0.0
    %804 = vmatprep.subr.mxu0 0.0
    %805 = vmatpush1.msra.mxu0 0.0
    %806 = vmatprep.subr.mxu0 0.0
    %807 = vmatpush1.msra.mxu0 0.0
    %808 = vmatprep.subr.mxu0 0.0
    %809 = vmatpush1.msra.mxu0 0.0
    %810 = vmatprep.subr.mxu0 0.0
    %811 = vmatpush1.msra.mxu0 0.0
    %812 = vmatprep.subr.mxu0 0.0
    %813 = vmatpush1.msra.mxu0 0.0
    %814 = vmatprep.subr.mxu0 0.0
    %815 = vmatpush1.msra.mxu0 0.0
    %816 = vmatprep.subr.mxu0 0.0
    %817 = vmatpush1.msra.mxu0 0.0
    %818 = vmatprep.subr.mxu0 0.0
    %819 = vmatpush1.msra.mxu0 0.0
    %820 = vmatprep.subr.mxu0 0.0
    %821 = vmatpush1.msra.mxu0 0.0
    %822 = vmatprep.subr.mxu0 0.0
    %823 = vmatpush1.msra.mxu0 0.0
    %824 = vmatprep.mubr.f32.mxu0 0.0
    %825 = vmatmul.mubr.f32.gmra.mrb[0].mxu0 %v616
    %v826 = vpop.f32.mrb[0].mxu0
    %v827 = vadd.f32 %v584, %v826
    %v828 = vpop.f32.mrb[0].mxu0
    %v829 = vadd.f32 %v588, %v828
    %830 = vdwg.mxu0
    %831 = vmatprep.subr.mxu0 %v528
    %832 = vmatpush1.msra.mxu0 %v527
    %833 = vmatprep.subr.mxu0 %v538
    %834 = vmatpush1.msra.mxu0 %v537
    %835 = vmatprep.subr.mxu0 %v548
    %836 = vmatpush1.msra.mxu0 %v547
    %837 = vmatprep.subr.mxu0 %v558
    %838 = vmatpush1.msra.mxu0 %v557
    %839 = vmatprep.subr.mxu0 0.0
    %840 = vmatpush1.msra.mxu0 0.0
    %841 = vmatprep.subr.mxu0 0.0
    %842 = vmatpush1.msra.mxu0 0.0
    %843 = vmatprep.subr.mxu0 0.0
    %844 = vmatpush1.msra.mxu0 0.0
    %845 = vmatprep.subr.mxu0 0.0
    %846 = vmatpush1.msra.mxu0 0.0
    %847 = vmatprep.subr.mxu0 0.0
    %848 = vmatpush1.msra.mxu0 0.0
    %849 = vmatprep.subr.mxu0 0.0
    %850 = vmatpush1.msra.mxu0 0.0
    %851 = vmatprep.subr.mxu0 0.0
    %852 = vmatpush1.msra.mxu0 0.0
    %853 = vmatprep.subr.mxu0 0.0
    %854 = vmatpush1.msra.mxu0 0.0
    %855 = vmatprep.subr.mxu0 0.0
    %856 = vmatpush1.msra.mxu0 0.0
    %857 = vmatprep.subr.mxu0 0.0
    %858 = vmatpush1.msra.mxu0 0.0
    %859 = vmatprep.subr.mxu0 0.0
    %860 = vmatpush1.msra.mxu0 0.0
    %861 = vmatprep.subr.mxu0 0.0
    %862 = vmatpush1.msra.mxu0 0.0
    %863 = vmatprep.subr.mxu0 0.0
    %864 = vmatpush1.msra.mxu0 0.0
    %865 = vmatprep.subr.mxu0 0.0
    %866 = vmatpush1.msra.mxu0 0.0
    %867 = vmatprep.subr.mxu0 0.0
    %868 = vmatpush1.msra.mxu0 0.0
    %869 = vmatprep.subr.mxu0 0.0
    %870 = vmatpush1.msra.mxu0 0.0
    %871 = vmatprep.subr.mxu0 0.0
    %872 = vmatpush1.msra.mxu0 0.0
    %873 = vmatprep.subr.mxu0 0.0
    %874 = vmatpush1.msra.mxu0 0.0
    %875 = vmatprep.subr.mxu0 0.0
    %876 = vmatpush1.msra.mxu0 0.0
    %877 = vmatprep.subr.mxu0 0.0
    %878 = vmatpush1.msra.mxu0 0.0
    %879 = vmatprep.subr.mxu0 0.0
    %880 = vmatpush1.msra.mxu0 0.0
    %881 = vmatprep.subr.mxu0 0.0
    %882 = vmatpush1.msra.mxu0 0.0
    %883 = vmatprep.subr.mxu0 0.0
    %884 = vmatpush1.msra.mxu0 0.0
    %885 = vmatprep.subr.mxu0 0.0
    %886 = vmatpush1.msra.mxu0 0.0
    %887 = vmatprep.subr.mxu0 0.0
    %888 = vmatpush1.msra.mxu0 0.0
    %889 = vmatprep.subr.mxu0 0.0
    %890 = vmatpush1.msra.mxu0 0.0
    %891 = vmatprep.subr.mxu0 0.0
    %892 = vmatpush1.msra.mxu0 0.0
    %893 = vmatprep.subr.mxu0 0.0
    %894 = vmatpush1.msra.mxu0 0.0
    %895 = vmatprep.mubr.f32.mxu0 0.0
    %896 = vmatmul.mubr.f32.gmra.mrb[0].mxu0 %v616
    %v897 = vpop.f32.mrb[0].mxu0
    %v898 = vadd.f32 %v592, %v897
    %v899 = vpop.f32.mrb[0].mxu0
    %v900 = vadd.f32 %v596, %v899
    %901 = vdwg.mxu0
    %902 = vmatprep.subr.mxu0 %v530
    %903 = vmatpush1.msra.mxu0 %v529
    %904 = vmatprep.subr.mxu0 %v540
    %905 = vmatpush1.msra.mxu0 %v539
    %906 = vmatprep.subr.mxu0 %v550
    %907 = vmatpush1.msra.mxu0 %v549
    %908 = vmatprep.subr.mxu0 %v560
    %909 = vmatpush1.msra.mxu0 %v559
    %910 = vmatprep.subr.mxu0 0.0
    %911 = vmatpush1.msra.mxu0 0.0
    %912 = vmatprep.subr.mxu0 0.0
    %913 = vmatpush1.msra.mxu0 0.0
    %914 = vmatprep.subr.mxu0 0.0
    %915 = vmatpush1.msra.mxu0 0.0
    %916 = vmatprep.subr.mxu0 0.0
    %917 = vmatpush1.msra.mxu0 0.0
    %918 = vmatprep.subr.mxu0 0.0
    %919 = vmatpush1.msra.mxu0 0.0
    %920 = vmatprep.subr.mxu0 0.0
    %921 = vmatpush1.msra.mxu0 0.0
    %922 = vmatprep.subr.mxu0 0.0
    %923 = vmatpush1.msra.mxu0 0.0
    %924 = vmatprep.subr.mxu0 0.0
    %925 = vmatpush1.msra.mxu0 0.0
    %926 = vmatprep.subr.mxu0 0.0
    %927 = vmatpush1.msra.mxu0 0.0
    %928 = vmatprep.subr.mxu0 0.0
    %929 = vmatpush1.msra.mxu0 0.0
    %930 = vmatprep.subr.mxu0 0.0
    %931 = vmatpush1.msra.mxu0 0.0
    %932 = vmatprep.subr.mxu0 0.0
    %933 = vmatpush1.msra.mxu0 0.0
    %934 = vmatprep.subr.mxu0 0.0
    %935 = vmatpush1.msra.mxu0 0.0
    %936 = vmatprep.subr.mxu0 0.0
    %937 = vmatpush1.msra.mxu0 0.0
    %938 = vmatprep.subr.mxu0 0.0
    %939 = vmatpush1.msra.mxu0 0.0
    %940 = vmatprep.subr.mxu0 0.0
    %941 = vmatpush1.msra.mxu0 0.0
    %942 = vmatprep.subr.mxu0 0.0
    %943 = vmatpush1.msra.mxu0 0.0
    %944 = vmatprep.subr.mxu0 0.0
    %945 = vmatpush1.msra.mxu0 0.0
    %946 = vmatprep.subr.mxu0 0.0
    %947 = vmatpush1.msra.mxu0 0.0
    %948 = vmatprep.subr.mxu0 0.0
    %949 = vmatpush1.msra.mxu0 0.0
    %950 = vmatprep.subr.mxu0 0.0
    %951 = vmatpush1.msra.mxu0 0.0
    %952 = vmatprep.subr.mxu0 0.0
    %953 = vmatpush1.msra.mxu0 0.0
    %954 = vmatprep.subr.mxu0 0.0
    %955 = vmatpush1.msra.mxu0 0.0
    %956 = vmatprep.subr.mxu0 0.0
    %957 = vmatpush1.msra.mxu0 0.0
    %958 = vmatprep.subr.mxu0 0.0
    %959 = vmatpush1.msra.mxu0 0.0
    %960 = vmatprep.subr.mxu0 0.0
    %961 = vmatpush1.msra.mxu0 0.0
    %962 = vmatprep.subr.mxu0 0.0
    %963 = vmatpush1.msra.mxu0 0.0
    %964 = vmatprep.subr.mxu0 0.0
    %965 = vmatpush1.msra.mxu0 0.0
    %966 = vmatprep.mubr.f32.mxu0 0.0
    %967 = vmatmul.mubr.f32.gmra.mrb[0].mxu0 %v616
    %v968 = vpop.f32.mrb[0].mxu0
    %v969 = vadd.f32 %v600, %v968
    %v970 = vpop.f32.mrb[0].mxu0
    %v971 = vadd.f32 %v604, %v970
    %972 = vdwg.mxu0
    %973 = vmax.xlane.f32.xlu0 %v685
    %v974 = vpop.xlane.xlu0 %973
    %v975 = vsub.f32 %v685, %v974
    %v976 = vmul.f32 %v975, 1.442695
    %v977 = vpow.pop %v976
    %978 = vadd.xlane.f32.xlu0 %v977
    %v979 = vpop.xlane.xlu0 %978
    %v980 = vrcp.pop %v979
    %v981 = vmul.f32 %v979, %v980
    %v982 = vsub.f32 2.0, %v981
    %v983 = vmul.f32 %v980, %v982
    %v984 = vmul.f32 %v977, %v983
    %985 = vst [vmem:[#allocation19] sm:$0xff] %v984
    %986 = vmax.xlane.f32.xlu0 %v687
    %v987 = vpop.xlane.xlu0 %986
    %v988 = vsub.f32 %v687, %v987
    %v989 = vmul.f32 %v988, 1.442695
    %v990 = vpow.pop %v989
    %991 = vadd.xlane.f32.xlu0 %v990
    %v992 = vpop.xlane.xlu0 %991
    %v993 = vrcp.pop %v992
    %v994 = vmul.f32 %v992, %v993
    %v995 = vsub.f32 2.0, %v994
    %v996 = vmul.f32 %v993, %v995
    %v997 = vmul.f32 %v990, %v996
    %998 = vst [vmem:[#allocation19 + $0x8] sm:$0xff] %v997
    %999 = vmax.xlane.f32.xlu0 %v756
    %v1000 = vpop.xlane.xlu0 %999
    %v1001 = vsub.f32 %v756, %v1000
    %v1002 = vmul.f32 %v1001, 1.442695
    %v1003 = vpow.pop %v1002
    %1004 = vadd.xlane.f32.xlu0 %v1003
    %v1005 = vpop.xlane.xlu0 %1004
    %v1006 = vrcp.pop %v1005
    %v1007 = vmul.f32 %v1005, %v1006
    %v1008 = vsub.f32 2.0, %v1007
    %v1009 = vmul.f32 %v1006, %v1008
    %v1010 = vmul.f32 %v1003, %v1009
    %1011 = vst [vmem:[#allocation19 + $0x10] sm:$0xff] %v1010
    %1012 = vmax.xlane.f32.xlu0 %v758
    %v1013 = vpop.xlane.xlu0 %1012
    %v1014 = vsub.f32 %v758, %v1013
    %v1015 = vmul.f32 %v1014, 1.442695
    %v1016 = vpow.pop %v1015
    %1017 = vadd.xlane.f32.xlu0 %v1016
    %v1018 = vpop.xlane.xlu0 %1017
    %v1019 = vrcp.pop %v1018
    %v1020 = vmul.f32 %v1018, %v1019
    %v1021 = vsub.f32 2.0, %v1020
    %v1022 = vmul.f32 %v1019, %v1021
    %v1023 = vmul.f32 %v1016, %v1022
    %1024 = vst [vmem:[#allocation19 + $0x18] sm:$0xff] %v1023
    %1025 = vmax.xlane.f32.xlu0 %v827
    %v1026 = vpop.xlane.xlu0 %1025
    %v1027 = vsub.f32 %v827, %v1026
    %v1028 = vmul.f32 %v1027, 1.442695
    %v1029 = vpow.pop %v1028
    %1030 = vadd.xlane.f32.xlu0 %v1029
    %v1031 = vpop.xlane.xlu0 %1030
    %v1032 = vrcp.pop %v1031
    %v1033 = vmul.f32 %v1031, %v1032
    %v1034 = vsub.f32 2.0, %v1033
    %v1035 = vmul.f32 %v1032, %v1034
    %v1036 = vmul.f32 %v1029, %v1035
    %1037 = vst [vmem:[#allocation19 + $0x20] sm:$0xff] %v1036
    %1038 = vmax.xlane.f32.xlu0 %v829
    %v1039 = vpop.xlane.xlu0 %1038
    %v1040 = vsub.f32 %v829, %v1039
    %v1041 = vmul.f32 %v1040, 1.442695
    %v1042 = vpow.pop %v1041
    %1043 = vadd.xlane.f32.xlu0 %v1042
    %v1044 = vpop.xlane.xlu0 %1043
    %v1045 = vrcp.pop %v1044
    %v1046 = vmul.f32 %v1044, %v1045
    %v1047 = vsub.f32 2.0, %v1046
    %v1048 = vmul.f32 %v1045, %v1047
    %v1049 = vmul.f32 %v1042, %v1048
    %1050 = vst [vmem:[#allocation19 + $0x28] sm:$0xff] %v1049
    %1051 = vmax.xlane.f32.xlu0 %v898
    %v1052 = vpop.xlane.xlu0 %1051
    %v1053 = vsub.f32 %v898, %v1052
    %v1054 = vmul.f32 %v1053, 1.442695
    %v1055 = vpow.pop %v1054
    %1056 = vadd.xlane.f32.xlu0 %v1055
    %v1057 = vpop.xlane.xlu0 %1056
    %v1058 = vrcp.pop %v1057
    %v1059 = vmul.f32 %v1057, %v1058
    %v1060 = vsub.f32 2.0, %v1059
    %v1061 = vmul.f32 %v1058, %v1060
    %v1062 = vmul.f32 %v1055, %v1061
    %1063 = vst [vmem:[#allocation19 + $0x30] sm:$0xff] %v1062
    %1064 = vmax.xlane.f32.xlu0 %v900
    %v1065 = vpop.xlane.xlu0 %1064
    %v1066 = vsub.f32 %v900, %v1065
    %v1067 = vmul.f32 %v1066, 1.442695
    %v1068 = vpow.pop %v1067
    %1069 = vadd.xlane.f32.xlu0 %v1068
    %v1070 = vpop.xlane.xlu0 %1069
    %v1071 = vrcp.pop %v1070
    %v1072 = vmul.f32 %v1070, %v1071
    %v1073 = vsub.f32 2.0, %v1072
    %v1074 = vmul.f32 %v1071, %v1073
    %v1075 = vmul.f32 %v1068, %v1074
    %1076 = vst [vmem:[#allocation19 + $0x38] sm:$0xff] %v1075
    %1077 = vmax.xlane.f32.xlu0 %v969
    %v1078 = vpop.xlane.xlu0 %1077
    %v1079 = vsub.f32 %v969, %v1078
    %v1080 = vmul.f32 %v1079, 1.442695
    %v1081 = vpow.pop %v1080
    %1082 = vadd.xlane.f32.xlu0 %v1081
    %v1083 = vpop.xlane.xlu0 %1082
    %v1084 = vrcp.pop %v1083
    %v1085 = vmul.f32 %v1083, %v1084
    %v1086 = vsub.f32 2.0, %v1085
    %v1087 = vmul.f32 %v1084, %v1086
    %v1088 = vmul.f32 %v1081, %v1087
    %1089 = vst [vmem:[#allocation19 + $0x40] sm:$0xff] %v1088
    %1090 = vmax.xlane.f32.xlu0 %v971
    %v1091 = vpop.xlane.xlu0 %1090
    %v1092 = vsub.f32 %v971, %v1091
    %v1093 = vmul.f32 %v1092, 1.442695
    %v1094 = vpow.pop %v1093
    %1095 = vadd.xlane.f32.xlu0 %v1094
    %v1096 = vpop.xlane.xlu0 %1095
    %v1097 = vrcp.pop %v1096
    %v1098 = vmul.f32 %v1096, %v1097
    %v1099 = vsub.f32 2.0, %v1098
    %v1100 = vmul.f32 %v1097, %v1099
    %v1101 = vmul.f32 %v1094, %v1100
    %1102 = vst [vmem:[#allocation19 + $0x48] sm:$0xff] %v1101
    // Predicated region
    $region102: #{tpu_custom_call.1} parent=1 // pred_check
      _
    $region103: #{tpu_custom_call.1} parent=1 // pred_check_branch
      %1104 = sbr.rel (0) target = $region105
    $region104: #{tpu_custom_call.1} parent=1 // pred_region
      %s1106 = ssub.s32 1280, 1280
      %1107 = vsyncadd [#allocation4], %s1106
      %s1109 = sshll.u32 [#allocation19], 4
      %s1110 = int_to_ptr.vmem [resolvable:$true] %s1109
      %1112 = dma.vmem_to_hbm [thread:$0]  %s1110, 1280, %s15, [#allocation4]
    $region105: #{tpu_custom_call.1} parent=1 // pred_fallthru
      _
    // Predicated region
    $region106: #{tpu_custom_call.1} parent=1 // pred_check
      _
    $region107: #{tpu_custom_call.1} parent=1 // pred_check_branch
      %1114 = sbr.rel (0) target = $region109
    $region108: #{tpu_custom_call.1} parent=1 // pred_region
      %1115 = dma.done [#allocation4], 1280
    $region109: #{tpu_custom_call.1} parent=1 // pred_fallthru
      _
    %1116 = vsyncpa [#allocation3], 1
    %1117 = vsyncpa [#allocation6], 1
    %1118 = vsyncpa [#allocation9], 1
    %1119 = vsyncpa [#allocation12], 1
    %1120 = vsyncpa [#allocation15], 1
    %1121 = vsyncpa [#allocation18], 1
    %1122 = vsyncpa [#allocation4], 1

</llo_original>
